<compile_context>
chip_gen: v7x
topology: tpu7x:2x2x1
jax: 0.10.0
libtpu: 0.0.40
codegen_flags: <defaults>
</compile_context>

<pallas_src>
import functools

import jax
import jax.numpy as jnp
from jax.experimental import pallas as pl
from jax.experimental.pallas import tpu as pltpu

_LANE = 128  # TPU lane width; output feature dims are padded to multiples.


def _round_up(n, m):
    return ((n + m - 1) // m) * m


def _pick_tm(batch):
    """Largest batch tile (<=512) that still leaves >=2 grid steps (v7x 2 TCs)."""
    if batch <= 128:
        return batch          # single full-batch tile (block dim == array dim)
    for tm in (512, 256, 128):
        if batch >= 2 * tm:
            return tm
    return 128


def _zero_index_map(ndim):
    return lambda i: (0,) * ndim


def _make_encoder_kernel(relu_flags):
    """Fused MLP kernel over one (TM, K0) batch tile.

    Kernel signature: kernel(x_ref, w0, b0, w1, b1, ..., out_ref).
    relu_flags[i] tells whether a ReLU follows layer i.
    """
    n_layers = len(relu_flags)

    def kernel(x_ref, *refs):
        out_ref = refs[-1]
        params = refs[:-1]
        h = x_ref[...]                       # (TM, K0) bf16 — already cast
        acc = None
        for i in range(n_layers):
            w = params[2 * i][...]           # (K, N_pad) bf16, VMEM-resident
            b = params[2 * i + 1][...]       # (1, N_pad) f32, VMEM-resident
            acc = jnp.dot(h, w, preferred_element_type=jnp.float32) + b
            if relu_flags[i]:
                acc = jnp.maximum(acc, 0.0)
            if i + 1 < n_layers:
                h = acc.astype(jnp.bfloat16)  # bf16 feed for the next MXU pass
        out_ref[...] = acc.astype(out_ref.dtype)

    return kernel


@functools.partial(jax.jit, static_argnames=("relu_flags", "tm", "use_buffered"))
def _encoder_forward(x_bf16, params_flat, *, relu_flags, tm, use_buffered):
    """x_bf16: (batch, K0) bf16; params_flat: (w0, b0, w1, b1, ...)."""
    batch, k0 = x_bf16.shape
    n_layers = len(relu_flags)
    out_pad = int(params_flat[-2].shape[1])
    grid = (pl.cdiv(batch, tm),)

    def const_spec(shape):
        # Constant block index -> the parameter stays VMEM-resident across the
        # whole grid; Buffered(1) avoids allocating a useless second buffer.
        if use_buffered:
            return pl.BlockSpec(shape, _zero_index_map(len(shape)),
                                pipeline_mode=pl.Buffered(1))
        return pl.BlockSpec(shape, _zero_index_map(len(shape)))

    in_specs = [pl.BlockSpec((tm, k0), lambda i: (i, 0))]
    for li in range(n_layers):
        in_specs.append(const_spec(tuple(params_flat[2 * li].shape)))
        in_specs.append(const_spec(tuple(params_flat[2 * li + 1].shape)))
    out_specs = pl.BlockSpec((tm, out_pad), lambda i: (i, 0))

    # --- accurate VMEM budget ---------------------------------------------
    param_bytes = sum(int(p.size) * p.dtype.itemsize for p in params_flat)
    if not use_buffered:
        param_bytes *= 2                     # pipeline double-buffers params
    max_n = max(int(params_flat[2 * li].shape[1]) for li in range(n_layers))
    act_bytes = (2 * tm * k0 * 2            # double-buffered bf16 x tiles
                 + 2 * tm * out_pad * 4     # double-buffered f32 out tiles
                 + tm * max_n * 4           # widest live f32 hidden
                 + tm * max_n * 2)          # its bf16 cast copy
    try:
        vmem_cap = int(pltpu.get_tpu_info().vmem_capacity_bytes)
    except Exception:  # pragma: no cover - conservative default (v7x = 64 MiB)
        vmem_cap = 64 << 20
    vmem_ceiling = vmem_cap - (8 << 20)     # headroom for Mosaic scratch
    vmem_limit = int(min(max(param_bytes + act_bytes + (4 << 20), 32 << 20),
                         vmem_ceiling))
    # TODO(synk): if param_bytes does not fit the per-TC VMEM (real DeepSynergy
    # widths, e.g. a ~200 MB first-layer weight, esp. on v7x's 64 MiB), split
    # layer 0 over an N-tile grid axis (2-D grid, W0 BlockSpec (K0, TN)) or
    # stream it with pltpu.emit_pipeline, keeping only the small later layers
    # resident.  TODO(synk): on v7x, fp8 weights would halve HBM/VMEM again.

    kernel = _make_encoder_kernel(relu_flags)
    return pl.pallas_call(
        kernel,
        out_shape=jax.ShapeDtypeStruct((batch, out_pad), jnp.float32),
        grid=grid,
        in_specs=in_specs,
        out_specs=out_specs,
        compiler_params=pltpu.CompilerParams(
            dimension_semantics=("parallel",),   # batch tiles are independent
            vmem_limit_bytes=vmem_limit),
    )(x_bf16, *params_flat)


def init_encoder_params(key, input_size, layers):
    """torch.nn.Linear-style init (U(-1/sqrt(fan_in), +bound)).

    Layer 0 keeps its K dim unpadded (= input_size) so x needs no column pad;
    all output dims are zero-padded to multiples of 128 (lane-dense).
    Returns list of (w: (K, N_pad) bf16, b: (1, N_pad) f32).
    """
    dims = [input_size] + list(layers)
    params = []
    for i in range(len(layers)):
        fan_in, fan_out = dims[i], dims[i + 1]
        k = fan_in if i == 0 else _round_up(fan_in, _LANE)
        n_pad = _round_up(fan_out, _LANE)
        key, kw, kb = jax.random.split(key, 3)
        bound = float(fan_in) ** -0.5
        w = jax.random.uniform(kw, (fan_in, fan_out), jnp.float32, -bound, bound)
        b = jax.random.uniform(kb, (fan_out,), jnp.float32, -bound, bound)
        w_pad = jnp.zeros((k, n_pad), jnp.float32).at[:fan_in, :fan_out].set(w)
        b_pad = jnp.zeros((1, n_pad), jnp.float32).at[0, :fan_out].set(b)
        params.append((w_pad.astype(jnp.bfloat16), b_pad))
    return params


class EncoderPallas:
    """Inference-mode equivalent of the PyTorch Encoder module."""

    def __init__(self, input_size, layers, input_dropout=0.0, hidden_dropout=0.0,
                 key=jax.random.PRNGKey(0)):
        # TODO(synk): training-mode Dropout (p > 0) is not implemented; the
        # module defaults (0.0) add no Dropout layers, so inference matches.
        assert input_dropout == 0.0 and hidden_dropout == 0.0
        self.input_size = int(input_size)
        self.layers = list(layers)
        self.params = init_encoder_params(key, input_size, layers)
        self.params_flat = tuple(p for wb in self.params for p in wb)
        # ReLU follows the first Linear unconditionally (so a 1-layer Encoder
        # ends in ReLU, exactly like the reference nn.Sequential); for i >= 1
        # a ReLU follows only if the layer is not the last one.
        n = len(self.layers)
        self.relu_flags = tuple([True] + [i < n - 1 for i in range(1, n)])
        self._use_buffered = None  # resolved on first call (Buffered(1) probe)

    def __call__(self, x):
        batch = x.shape[0]
        tm = _pick_tm(batch)
        x_bf16 = x.astype(jnp.bfloat16)   # bf16 DMA into the kernel; no padding
        if self._use_buffered is None:
            try:
                out_pad = _encoder_forward(
                    x_bf16, self.params_flat, relu_flags=self.relu_flags,
                    tm=tm, use_buffered=True)
                jax.block_until_ready(out_pad)
                self._use_buffered = True
            except Exception:
                # Fallback if pl.Buffered is unsupported on this JAX build.
                self._use_buffered = False
                out_pad = _encoder_forward(
                    x_bf16, self.params_flat, relu_flags=self.relu_flags,
                    tm=tm, use_buffered=False)
        else:
            out_pad = _encoder_forward(
                x_bf16, self.params_flat, relu_flags=self.relu_flags,
                tm=tm, use_buffered=self._use_buffered)
        return out_pad[:, :self.layers[-1]]


if __name__ == "__main__":
    # Small shapes consistent with the module; batch=200 with TM=128 gives a
    # ragged 2-step batch grid, exercising both tiling and the padded last tile.
    batch = 200
    input_size = 32
    layers = [64, 48, 16]

    key = jax.random.PRNGKey(0)
    k_x, k_p = jax.random.split(key)
    x = jax.random.normal(k_x, (batch, input_size), dtype=jnp.float32)

    enc = EncoderPallas(input_size, layers, key=k_p)
    y = enc(x)
    jax.block_until_ready(y)
    assert y.shape == (batch, layers[-1])

    # Pure-JAX reference of the same math (bf16 weights/activations, f32 accum).
    h = x.astype(jnp.bfloat16)
    acc = None
    for (w, b), f in zip(enc.params, enc.relu_flags):
        acc = jnp.dot(h, w, preferred_element_type=jnp.float32) + b
        if f:
            acc = jnp.maximum(acc, 0.0)
        h = acc.astype(jnp.bfloat16)
    ref = acc[:, :layers[-1]]
    err = float(jnp.max(jnp.abs(y - ref)))
    assert jnp.allclose(y, ref, atol=2e-3, rtol=2e-3), err

    print("KERNEL_OK")
</pallas_src>

<mosaic_0001>
module attributes {stable_mosaic.version = 11 : i64} {
  func.func @kernel(%arg0: i32, %arg1: memref<128x32xbf16, #tpu.memory_space<vmem>>, %arg2: memref<32x128xbf16, #tpu.memory_space<vmem>>, %arg3: memref<1x128xf32, #tpu.memory_space<vmem>>, %arg4: memref<128x128xbf16, #tpu.memory_space<vmem>>, %arg5: memref<1x128xf32, #tpu.memory_space<vmem>>, %arg6: memref<128x128xbf16, #tpu.memory_space<vmem>>, %arg7: memref<1x128xf32, #tpu.memory_space<vmem>>, %arg8: memref<128x128xf32, #tpu.memory_space<vmem>>) attributes {dimension_semantics = [#tpu.dimension_semantics<parallel>], iteration_bounds = array<i64: 2>, scalar_prefetch = 0 : i64, scratch_operands = 0 : i64, tpu.core_type = #tpu.core_type<tc>, window_params = [{transform_indices = @transform_0, window_bounds = array<i64: 128, 32>}, {pipeline_mode = #tpu.pipeline_mode<synchronous>, transform_indices = @transform_1, window_bounds = array<i64: 32, 128>}, {pipeline_mode = #tpu.pipeline_mode<synchronous>, transform_indices = @transform_2, window_bounds = array<i64: 1, 128>}, {pipeline_mode = #tpu.pipeline_mode<synchronous>, transform_indices = @transform_3, window_bounds = array<i64: 128, 128>}, {pipeline_mode = #tpu.pipeline_mode<synchronous>, transform_indices = @transform_4, window_bounds = array<i64: 1, 128>}, {pipeline_mode = #tpu.pipeline_mode<synchronous>, transform_indices = @transform_5, window_bounds = array<i64: 128, 128>}, {pipeline_mode = #tpu.pipeline_mode<synchronous>, transform_indices = @transform_6, window_bounds = array<i64: 1, 128>}, {transform_indices = @transform_7, window_bounds = array<i64: 128, 128>}]} {
    %c0 = arith.constant 0 : index
    %c0_0 = arith.constant 0 : index
    %0 = vector.load %arg1[%c0, %c0_0] : memref<128x32xbf16, #tpu.memory_space<vmem>>, vector<128x32xbf16>
    %c0_1 = arith.constant 0 : index
    %c0_2 = arith.constant 0 : index
    %1 = vector.load %arg2[%c0_1, %c0_2] : memref<32x128xbf16, #tpu.memory_space<vmem>>, vector<32x128xbf16>
    %c0_3 = arith.constant 0 : index
    %c0_4 = arith.constant 0 : index
    %2 = vector.load %arg3[%c0_3, %c0_4] : memref<1x128xf32, #tpu.memory_space<vmem>>, vector<1x128xf32>
    %cst = arith.constant dense<0.000000e+00> : vector<128x128xf32>
    %3 = tpu.matmul %0, %1, %cst {dimension_numbers = #tpu.dot_dimension_numbers<[1], [0], [0], [1], [0, 0, 1, 1], [], []>} : vector<128x32xbf16>, vector<32x128xbf16>, vector<128x128xf32> -> vector<128x128xf32>
    %4 = vector.broadcast %2 : vector<1x128xf32> to vector<128x128xf32>
    %5 = arith.addf %3, %4 : vector<128x128xf32>
    %cst_5 = arith.constant 0.000000e+00 : f32
    %6 = vector.broadcast %cst_5 : f32 to vector<128x128xf32>
    %7 = arith.maximumf %5, %6 : vector<128x128xf32>
    %8 = arith.truncf %7 : vector<128x128xf32> to vector<128x128xbf16>
    %c0_6 = arith.constant 0 : index
    %c0_7 = arith.constant 0 : index
    %9 = vector.load %arg4[%c0_6, %c0_7] : memref<128x128xbf16, #tpu.memory_space<vmem>>, vector<128x128xbf16>
    %c0_8 = arith.constant 0 : index
    %c0_9 = arith.constant 0 : index
    %10 = vector.load %arg5[%c0_8, %c0_9] : memref<1x128xf32, #tpu.memory_space<vmem>>, vector<1x128xf32>
    %cst_10 = arith.constant dense<0.000000e+00> : vector<128x128xf32>
    %11 = tpu.matmul %8, %9, %cst_10 {dimension_numbers = #tpu.dot_dimension_numbers<[1], [0], [0], [1], [0, 0, 1, 1], [], []>} : vector<128x128xbf16>, vector<128x128xbf16>, vector<128x128xf32> -> vector<128x128xf32>
    %12 = vector.broadcast %10 : vector<1x128xf32> to vector<128x128xf32>
    %13 = arith.addf %11, %12 : vector<128x128xf32>
    %cst_11 = arith.constant 0.000000e+00 : f32
    %14 = vector.broadcast %cst_11 : f32 to vector<128x128xf32>
    %15 = arith.maximumf %13, %14 : vector<128x128xf32>
    %16 = arith.truncf %15 : vector<128x128xf32> to vector<128x128xbf16>
    %c0_12 = arith.constant 0 : index
    %c0_13 = arith.constant 0 : index
    %17 = vector.load %arg6[%c0_12, %c0_13] : memref<128x128xbf16, #tpu.memory_space<vmem>>, vector<128x128xbf16>
    %c0_14 = arith.constant 0 : index
    %c0_15 = arith.constant 0 : index
    %18 = vector.load %arg7[%c0_14, %c0_15] : memref<1x128xf32, #tpu.memory_space<vmem>>, vector<1x128xf32>
    %cst_16 = arith.constant dense<0.000000e+00> : vector<128x128xf32>
    %19 = tpu.matmul %16, %17, %cst_16 {dimension_numbers = #tpu.dot_dimension_numbers<[1], [0], [0], [1], [0, 0, 1, 1], [], []>} : vector<128x128xbf16>, vector<128x128xbf16>, vector<128x128xf32> -> vector<128x128xf32>
    %20 = vector.broadcast %18 : vector<1x128xf32> to vector<128x128xf32>
    %21 = arith.addf %19, %20 : vector<128x128xf32>
    %c0_17 = arith.constant 0 : index
    %c0_18 = arith.constant 0 : index
    %22 = vector.load %arg8[%c0_17, %c0_18] : memref<128x128xf32, #tpu.memory_space<vmem>>, vector<128x128xf32>
    tpu.vector_store %arg8[%c0_17, %c0_18], %21 {strides = array<i32>} : memref<128x128xf32, #tpu.memory_space<vmem>>, vector<128x128xf32>,
    return
  }
  func.func @transform_0(%arg0: i32) -> (i32, i32) {
    %c0_i32 = arith.constant 0 : i32
    %c0_i32_0 = arith.constant 0 : i32
    return %arg0, %c0_i32 : i32, i32
  }
  func.func @transform_1(%arg0: i32) -> (i32, i32) {
    %c0_i32 = arith.constant 0 : i32
    %c0_i32_0 = arith.constant 0 : i32
    %c0_i32_1 = arith.constant 0 : i32
    return %c0_i32, %c0_i32_0 : i32, i32
  }
  func.func @transform_2(%arg0: i32) -> (i32, i32) {
    %c0_i32 = arith.constant 0 : i32
    %c0_i32_0 = arith.constant 0 : i32
    %c0_i32_1 = arith.constant 0 : i32
    return %c0_i32, %c0_i32_0 : i32, i32
  }
  func.func @transform_3(%arg0: i32) -> (i32, i32) {
    %c0_i32 = arith.constant 0 : i32
    %c0_i32_0 = arith.constant 0 : i32
    %c0_i32_1 = arith.constant 0 : i32
    return %c0_i32, %c0_i32_0 : i32, i32
  }
  func.func @transform_4(%arg0: i32) -> (i32, i32) {
    %c0_i32 = arith.constant 0 : i32
    %c0_i32_0 = arith.constant 0 : i32
    %c0_i32_1 = arith.constant 0 : i32
    return %c0_i32, %c0_i32_0 : i32, i32
  }
  func.func @transform_5(%arg0: i32) -> (i32, i32) {
    %c0_i32 = arith.constant 0 : i32
    %c0_i32_0 = arith.constant 0 : i32
    %c0_i32_1 = arith.constant 0 : i32
    return %c0_i32, %c0_i32_0 : i32, i32
  }
  func.func @transform_6(%arg0: i32) -> (i32, i32) {
    %c0_i32 = arith.constant 0 : i32
    %c0_i32_0 = arith.constant 0 : i32
    %c0_i32_1 = arith.constant 0 : i32
    return %c0_i32, %c0_i32_0 : i32, i32
  }
  func.func @transform_7(%arg0: i32) -> (i32, i32) {
    %c0_i32 = arith.constant 0 : i32
    %c0_i32_0 = arith.constant 0 : i32
    return %arg0, %c0_i32 : i32, i32
  }
}

module attributes {stable_mosaic.version = 11 : i64} {
  func.func @kernel(%arg0: i32, %arg1: memref<128x32xbf16, #tpu.memory_space<vmem>>, %arg2: memref<32x128xbf16, #tpu.memory_space<vmem>>, %arg3: memref<1x128xf32, #tpu.memory_space<vmem>>, %arg4: memref<128x128xbf16, #tpu.memory_space<vmem>>, %arg5: memref<1x128xf32, #tpu.memory_space<vmem>>, %arg6: memref<128x128xbf16, #tpu.memory_space<vmem>>, %arg7: memref<1x128xf32, #tpu.memory_space<vmem>>, %arg8: memref<128x128xf32, #tpu.memory_space<vmem>>) attributes {dimension_semantics = [#tpu.dimension_semantics<parallel>], iteration_bounds = array<i64: 2>, scalar_prefetch = 0 : i64, scratch_operands = 0 : i64, tpu.core_type = #tpu.core_type<tc>, window_params = [{transform_indices = @transform_0, window_bounds = array<i64: 128, 32>}, {pipeline_mode = #tpu.pipeline_mode<synchronous>, transform_indices = @transform_1, window_bounds = array<i64: 32, 128>}, {pipeline_mode = #tpu.pipeline_mode<synchronous>, transform_indices = @transform_2, window_bounds = array<i64: 1, 128>}, {pipeline_mode = #tpu.pipeline_mode<synchronous>, transform_indices = @transform_3, window_bounds = array<i64: 128, 128>}, {pipeline_mode = #tpu.pipeline_mode<synchronous>, transform_indices = @transform_4, window_bounds = array<i64: 1, 128>}, {pipeline_mode = #tpu.pipeline_mode<synchronous>, transform_indices = @transform_5, window_bounds = array<i64: 128, 128>}, {pipeline_mode = #tpu.pipeline_mode<synchronous>, transform_indices = @transform_6, window_bounds = array<i64: 1, 128>}, {transform_indices = @transform_7, window_bounds = array<i64: 128, 128>}]} {
    %c0 = arith.constant 0 : index
    %c0_0 = arith.constant 0 : index
    %0 = vector.load %arg1[%c0, %c0_0] : memref<128x32xbf16, #tpu.memory_space<vmem>>, vector<128x32xbf16>
    %c0_1 = arith.constant 0 : index
    %c0_2 = arith.constant 0 : index
    %1 = vector.load %arg2[%c0_1, %c0_2] : memref<32x128xbf16, #tpu.memory_space<vmem>>, vector<32x128xbf16>
    %c0_3 = arith.constant 0 : index
    %c0_4 = arith.constant 0 : index
    %2 = vector.load %arg3[%c0_3, %c0_4] : memref<1x128xf32, #tpu.memory_space<vmem>>, vector<1x128xf32>
    %cst = arith.constant dense<0.000000e+00> : vector<128x128xf32>
    %3 = tpu.matmul %0, %1, %cst {dimension_numbers = #tpu.dot_dimension_numbers<[1], [0], [0], [1], [0, 0, 1, 1], [], []>} : vector<128x32xbf16>, vector<32x128xbf16>, vector<128x128xf32> -> vector<128x128xf32>
    %4 = vector.broadcast %2 : vector<1x128xf32> to vector<128x128xf32>
    %5 = arith.addf %3, %4 : vector<128x128xf32>
    %cst_5 = arith.constant 0.000000e+00 : f32
    %6 = vector.broadcast %cst_5 : f32 to vector<128x128xf32>
    %7 = arith.maximumf %5, %6 : vector<128x128xf32>
    %8 = arith.truncf %7 : vector<128x128xf32> to vector<128x128xbf16>
    %c0_6 = arith.constant 0 : index
    %c0_7 = arith.constant 0 : index
    %9 = vector.load %arg4[%c0_6, %c0_7] : memref<128x128xbf16, #tpu.memory_space<vmem>>, vector<128x128xbf16>
    %c0_8 = arith.constant 0 : index
    %c0_9 = arith.constant 0 : index
    %10 = vector.load %arg5[%c0_8, %c0_9] : memref<1x128xf32, #tpu.memory_space<vmem>>, vector<1x128xf32>
    %cst_10 = arith.constant dense<0.000000e+00> : vector<128x128xf32>
    %11 = tpu.matmul %8, %9, %cst_10 {dimension_numbers = #tpu.dot_dimension_numbers<[1], [0], [0], [1], [0, 0, 1, 1], [], []>} : vector<128x128xbf16>, vector<128x128xbf16>, vector<128x128xf32> -> vector<128x128xf32>
    %12 = vector.broadcast %10 : vector<1x128xf32> to vector<128x128xf32>
    %13 = arith.addf %11, %12 : vector<128x128xf32>
    %cst_11 = arith.constant 0.000000e+00 : f32
    %14 = vector.broadcast %cst_11 : f32 to vector<128x128xf32>
    %15 = arith.maximumf %13, %14 : vector<128x128xf32>
    %16 = arith.truncf %15 : vector<128x128xf32> to vector<128x128xbf16>
    %c0_12 = arith.constant 0 : index
    %c0_13 = arith.constant 0 : index
    %17 = vector.load %arg6[%c0_12, %c0_13] : memref<128x128xbf16, #tpu.memory_space<vmem>>, vector<128x128xbf16>
    %c0_14 = arith.constant 0 : index
    %c0_15 = arith.constant 0 : index
    %18 = vector.load %arg7[%c0_14, %c0_15] : memref<1x128xf32, #tpu.memory_space<vmem>>, vector<1x128xf32>
    %cst_16 = arith.constant dense<0.000000e+00> : vector<128x128xf32>
    %19 = tpu.matmul %16, %17, %cst_16 {dimension_numbers = #tpu.dot_dimension_numbers<[1], [0], [0], [1], [0, 0, 1, 1], [], []>} : vector<128x128xbf16>, vector<128x128xbf16>, vector<128x128xf32> -> vector<128x128xf32>
    %20 = vector.broadcast %18 : vector<1x128xf32> to vector<128x128xf32>
    %21 = arith.addf %19, %20 : vector<128x128xf32>
    %c0_17 = arith.constant 0 : index
    %c0_18 = arith.constant 0 : index
    %22 = vector.load %arg8[%c0_17, %c0_18] : memref<128x128xf32, #tpu.memory_space<vmem>>, vector<128x128xf32>
    tpu.vector_store %arg8[%c0_17, %c0_18], %21 {strides = array<i32>} : memref<128x128xf32, #tpu.memory_space<vmem>>, vector<128x128xf32>,
    return
  }
  func.func @transform_0(%arg0: i32) -> (i32, i32) {
    %c0_i32 = arith.constant 0 : i32
    %c0_i32_0 = arith.constant 0 : i32
    return %arg0, %c0_i32 : i32, i32
  }
  func.func @transform_1(%arg0: i32) -> (i32, i32) {
    %c0_i32 = arith.constant 0 : i32
    %c0_i32_0 = arith.constant 0 : i32
    %c0_i32_1 = arith.constant 0 : i32
    return %c0_i32, %c0_i32_0 : i32, i32
  }
  func.func @transform_2(%arg0: i32) -> (i32, i32) {
    %c0_i32 = arith.constant 0 : i32
    %c0_i32_0 = arith.constant 0 : i32
    %c0_i32_1 = arith.constant 0 : i32
    return %c0_i32, %c0_i32_0 : i32, i32
  }
  func.func @transform_3(%arg0: i32) -> (i32, i32) {
    %c0_i32 = arith.constant 0 : i32
    %c0_i32_0 = arith.constant 0 : i32
    %c0_i32_1 = arith.constant 0 : i32
    return %c0_i32, %c0_i32_0 : i32, i32
  }
  func.func @transform_4(%arg0: i32) -> (i32, i32) {
    %c0_i32 = arith.constant 0 : i32
    %c0_i32_0 = arith.constant 0 : i32
    %c0_i32_1 = arith.constant 0 : i32
    return %c0_i32, %c0_i32_0 : i32, i32
  }
  func.func @transform_5(%arg0: i32) -> (i32, i32) {
    %c0_i32 = arith.constant 0 : i32
    %c0_i32_0 = arith.constant 0 : i32
    %c0_i32_1 = arith.constant 0 : i32
    return %c0_i32, %c0_i32_0 : i32, i32
  }
  func.func @transform_6(%arg0: i32) -> (i32, i32) {
    %c0_i32 = arith.constant 0 : i32
    %c0_i32_0 = arith.constant 0 : i32
    %c0_i32_1 = arith.constant 0 : i32
    return %c0_i32, %c0_i32_0 : i32, i32
  }
  func.func @transform_7(%arg0: i32) -> (i32, i32) {
    %c0_i32 = arith.constant 0 : i32
    %c0_i32_0 = arith.constant 0 : i32
    return %arg0, %c0_i32 : i32, i32
  }
}

</mosaic_0001>

<llo_original>
// kernel: _encoder_forward.1
$region0: #{_encoder_forward.1}
  #allocation0 [shape = 'u32[]', space=smem, size = 0x4, offset = 0x4, fixed_abs, tag = 'smem constant byte address 0x4 - core index']
  #allocation1 [shape = 'u32[144,128]{1,0:T(1,128)}', space=vmem, size = 0x12000, scoped, tag = 'internal scratch']
  %s0 = inlined_call_operand.vmem [shape: bf16[200,32], index: 0, kind: input, shape index: {}]
  %s1 = inlined_call_operand.hbm [shape: bf16[32,128], index: 1, kind: input, shape index: {}]
  %s2 = inlined_call_operand.vmem [shape: f32[1,128], index: 2, kind: input, shape index: {}]
  %s3 = inlined_call_operand.vmem [shape: bf16[128,128], index: 3, kind: input, shape index: {}]
  %s4 = inlined_call_operand.vmem [shape: f32[1,128], index: 4, kind: input, shape index: {}]
  %s5 = inlined_call_operand.vmem [shape: bf16[128,128], index: 5, kind: input, shape index: {}]
  %s6 = inlined_call_operand.vmem [shape: f32[1,128], index: 6, kind: input, shape index: {}]
  %s7 = inlined_call_operand.hbm [shape: f32[200,128], index: 7, kind: output, shape index: {}]
  %s8 = sld [smem:[#allocation0]]
  $region65: #{_encoder_forward.1} parent=0
    _
  %s10 = ssub.s32 1, %s8
  %s11 = scalar_select 0, %s10, %s8
  $region1: #{_encoder_forward.1} parent=0
    #allocation2 [shape = 'u8[8192]{0}', space=vmem, size = 0x2000, scoped, tag = 'input window, operand 1, single buffered']
    #allocation3 [shape = 's32[2]{0}', space=sflag, size = 0x8, scoped, tag = 'scoped memory for _encoder_forward.1']
    #allocation4 [shape = 's32[2]{0}', space=sflag, size = 0x8, scoped, tag = 'scoped memory for _encoder_forward.1']
    #allocation5 [shape = 'u8[131072]{0}', space=vmem, size = 0x20000, scoped, tag = 'output window, operand 0']
    %12 = vsyncpa [#allocation3], 0
    %13 = vsyncpa [#allocation4], 0
    %s14 = scalar_lea.sflag [#allocation4], 1
    %15 = vsyncpa %s14, 0
    loop: start=0, step=1, limit=4
    $region2: #{_encoder_forward.1} parent=1 // loop_pre_header
      _
    $region3: #{_encoder_forward.1} parent=1 // loop_header
      %s17 = sphi 0, %s21
      %p18 = scmp.ge.s32.totalorder %s17, 4
      %s27 = sphi 0, %s29
      %s30 = sphi 0, %s27
      %s31 = sphi 0, %s30
      %s47 = sphi 0, %s31
      %s51 = sphi 0, %s51
      %s53 = sphi 0, %s51
      %s54 = sphi 0, %s53
      %s68 = sphi 0, %s54
      %s72 = sphi 0, %s72
      %s74 = sphi 0, %s72
      %s75 = sphi 0, %s74
      %s89 = sphi 0, %s75
      %s93 = sphi 0, %s93
      %s95 = sphi 0, %s93
      %s96 = sphi 0, %s95
      %s110 = sphi 0, %s96
      %s114 = sphi 0, %s114
      %s116 = sphi 0, %s114
      %s117 = sphi 0, %s116
      %s131 = sphi 0, %s117
      %s135 = sphi 0, %s135
      %s137 = sphi 0, %s135
      %s138 = sphi 0, %s137
      %s152 = sphi 0, %s138
      %s156 = sphi 0, %s156
      %s158 = sphi 0, %s156
      %s159 = sphi 0, %s158
      %s173 = sphi 0, %s159
      %s179 = sphi 0, %s181
      %s182 = sphi 0, %s179
      %s183 = sphi 0, %s182
      %s199 = sphi 0, %s183
    $region4: #{_encoder_forward.1} parent=1 // loop_header_branch
      %20 = sbr.rel (%p18) target = $region8
    $region5: #{_encoder_forward.1} parent=1 // loop_body
      %s22 = ssub.s32 %s17, 1
      %s23 = ssub.s32 %s17, 2
      %s24 = sadd.s32 %s17, 1
      %s25 = ssub.s32 %s17, %s24
      %p26 = scmp.eq.s32.totalorder %s25, 0
      %s28 = sadd.s32 %s27, 1
      %s29 = scalar_select %p26, %s27, %s28
      %p32 = pneg %p26
      %p33 = scmp.eq.s32.totalorder %s17, 1
      %p34 = por %p32, %p33
      %p35 = scmp.ne.s32.totalorder %s27, %s30
      %p36 = scmp.eq.s32.totalorder %s17, 0
      %p37 = por %p35, %p36
      %p38 = scmp.ne.s32.totalorder %s27, %s30
      %p39 = scmp.eq.s32.totalorder %s22, 1
      %p40 = por %p38, %p39
      %p41 = scmp.ne.s32.totalorder %s30, %s31
      %p42 = scmp.eq.s32.totalorder %s22, 0
      %p43 = por %p41, %p42
      %p44 = scmp.ne.s32.totalorder %s30, %s31
      %p45 = scmp.eq.s32.totalorder %s23, 1
      %p46 = por %p44, %p45
      %p48 = scmp.ne.s32.totalorder %s31, %s47
      %p49 = scmp.eq.s32.totalorder %s23, 0
      %p50 = por %p48, %p49
      %s52 = sadd.s32 %s51, 1
      %p55 = scmp.eq.s32.totalorder %s17, 1
      %p56 = scmp.ne.s32.totalorder %s51, %s53
      %p57 = scmp.eq.s32.totalorder %s17, 0
      %p58 = por %p56, %p57
      %p59 = scmp.ne.s32.totalorder %s51, %s53
      %p60 = scmp.eq.s32.totalorder %s22, 1
      %p61 = por %p59, %p60
      %p62 = scmp.ne.s32.totalorder %s53, %s54
      %p63 = scmp.eq.s32.totalorder %s22, 0
      %p64 = por %p62, %p63
      %p65 = scmp.ne.s32.totalorder %s53, %s54
      %p66 = scmp.eq.s32.totalorder %s23, 1
      %p67 = por %p65, %p66
      %p69 = scmp.ne.s32.totalorder %s54, %s68
      %p70 = scmp.eq.s32.totalorder %s23, 0
      %p71 = por %p69, %p70
      %s73 = sadd.s32 %s72, 1
      %p76 = scmp.eq.s32.totalorder %s17, 1
      %p77 = scmp.ne.s32.totalorder %s72, %s74
      %p78 = scmp.eq.s32.totalorder %s17, 0
      %p79 = por %p77, %p78
      %p80 = scmp.ne.s32.totalorder %s72, %s74
      %p81 = scmp.eq.s32.totalorder %s22, 1
      %p82 = por %p80, %p81
      %p83 = scmp.ne.s32.totalorder %s74, %s75
      %p84 = scmp.eq.s32.totalorder %s22, 0
      %p85 = por %p83, %p84
      %p86 = scmp.ne.s32.totalorder %s74, %s75
      %p87 = scmp.eq.s32.totalorder %s23, 1
      %p88 = por %p86, %p87
      %p90 = scmp.ne.s32.totalorder %s75, %s89
      %p91 = scmp.eq.s32.totalorder %s23, 0
      %p92 = por %p90, %p91
      %s94 = sadd.s32 %s93, 1
      %p97 = scmp.eq.s32.totalorder %s17, 1
      %p98 = scmp.ne.s32.totalorder %s93, %s95
      %p99 = scmp.eq.s32.totalorder %s17, 0
      %p100 = por %p98, %p99
      %p101 = scmp.ne.s32.totalorder %s93, %s95
      %p102 = scmp.eq.s32.totalorder %s22, 1
      %p103 = por %p101, %p102
      %p104 = scmp.ne.s32.totalorder %s95, %s96
      %p105 = scmp.eq.s32.totalorder %s22, 0
      %p106 = por %p104, %p105
      %p107 = scmp.ne.s32.totalorder %s95, %s96
      %p108 = scmp.eq.s32.totalorder %s23, 1
      %p109 = por %p107, %p108
      %p111 = scmp.ne.s32.totalorder %s96, %s110
      %p112 = scmp.eq.s32.totalorder %s23, 0
      %p113 = por %p111, %p112
      %s115 = sadd.s32 %s114, 1
      %p118 = scmp.eq.s32.totalorder %s17, 1
      %p119 = scmp.ne.s32.totalorder %s114, %s116
      %p120 = scmp.eq.s32.totalorder %s17, 0
      %p121 = por %p119, %p120
      %p122 = scmp.ne.s32.totalorder %s114, %s116
      %p123 = scmp.eq.s32.totalorder %s22, 1
      %p124 = por %p122, %p123
      %p125 = scmp.ne.s32.totalorder %s116, %s117
      %p126 = scmp.eq.s32.totalorder %s22, 0
      %p127 = por %p125, %p126
      %p128 = scmp.ne.s32.totalorder %s116, %s117
      %p129 = scmp.eq.s32.totalorder %s23, 1
      %p130 = por %p128, %p129
      %p132 = scmp.ne.s32.totalorder %s117, %s131
      %p133 = scmp.eq.s32.totalorder %s23, 0
      %p134 = por %p132, %p133
      %s136 = sadd.s32 %s135, 1
      %p139 = scmp.eq.s32.totalorder %s17, 1
      %p140 = scmp.ne.s32.totalorder %s135, %s137
      %p141 = scmp.eq.s32.totalorder %s17, 0
      %p142 = por %p140, %p141
      %p143 = scmp.ne.s32.totalorder %s135, %s137
      %p144 = scmp.eq.s32.totalorder %s22, 1
      %p145 = por %p143, %p144
      %p146 = scmp.ne.s32.totalorder %s137, %s138
      %p147 = scmp.eq.s32.totalorder %s22, 0
      %p148 = por %p146, %p147
      %p149 = scmp.ne.s32.totalorder %s137, %s138
      %p150 = scmp.eq.s32.totalorder %s23, 1
      %p151 = por %p149, %p150
      %p153 = scmp.ne.s32.totalorder %s138, %s152
      %p154 = scmp.eq.s32.totalorder %s23, 0
      %p155 = por %p153, %p154
      %s157 = sadd.s32 %s156, 1
      %p160 = scmp.eq.s32.totalorder %s17, 1
      %p161 = scmp.ne.s32.totalorder %s156, %s158
      %p162 = scmp.eq.s32.totalorder %s17, 0
      %p163 = por %p161, %p162
      %p164 = scmp.ne.s32.totalorder %s156, %s158
      %p165 = scmp.eq.s32.totalorder %s22, 1
      %p166 = por %p164, %p165
      %p167 = scmp.ne.s32.totalorder %s158, %s159
      %p168 = scmp.eq.s32.totalorder %s22, 0
      %p169 = por %p167, %p168
      %p170 = scmp.ne.s32.totalorder %s158, %s159
      %p171 = scmp.eq.s32.totalorder %s23, 1
      %p172 = por %p170, %p171
      %p174 = scmp.ne.s32.totalorder %s159, %s173
      %p175 = scmp.eq.s32.totalorder %s23, 0
      %p176 = por %p174, %p175
      %s177 = ssub.s32 %s17, %s24
      %p178 = scmp.eq.s32.totalorder %s177, 0
      %s180 = sadd.s32 %s179, 1
      %s181 = scalar_select %p178, %s179, %s180
      %p184 = pneg %p178
      %p185 = scmp.eq.s32.totalorder %s17, 1
      %p186 = por %p184, %p185
      %p187 = scmp.ne.s32.totalorder %s179, %s182
      %p188 = scmp.eq.s32.totalorder %s17, 0
      %p189 = por %p187, %p188
      %p190 = scmp.ne.s32.totalorder %s179, %s182
      %p191 = scmp.eq.s32.totalorder %s22, 1
      %p192 = por %p190, %p191
      %p193 = scmp.ne.s32.totalorder %s182, %s183
      %p194 = scmp.eq.s32.totalorder %s22, 0
      %p195 = por %p193, %p194
      %p196 = scmp.ne.s32.totalorder %s182, %s183
      %p197 = scmp.eq.s32.totalorder %s23, 1
      %p198 = por %p196, %p197
      %p200 = scmp.ne.s32.totalorder %s183, %s199
      %p201 = scmp.eq.s32.totalorder %s23, 0
      %p202 = por %p200, %p201
      %p203 = scmp.le.s32.totalorder 1, %s17
      %p204 = scmp.lt.s32.totalorder %s17, 3
      %p205 = pnand %p203, %p204
      %p206 = pneg %p205
      // Predicated region
      $region9: #{_encoder_forward.1} parent=5 // pred_check
        _
      $region10: #{_encoder_forward.1} parent=5 // pred_check_branch
        %208 = sbr.rel (%p205) target = $region12
      $region11: #{_encoder_forward.1} parent=5 // pred_region
        %s209 = ssub.s32 %s17, 1
        // Predicated region
        $region13: #{_encoder_forward.1} parent=11 // pred_check
          %p210 = pneg %p64
        $region14: #{_encoder_forward.1} parent=11 // pred_check_branch
          %212 = sbr.rel (%p210) target = $region16
        $region15: #{_encoder_forward.1} parent=11 // pred_region
          %s214 = ssub.s32 256, 256
          %215 = vsyncadd [#allocation3], %s214
          %s216 = sshll.u32 [#allocation2], 4
          %s217 = int_to_ptr.vmem [resolvable:$true] %s216
          %222 = dma.hbm_to_vmem [thread:$0]  %s1, 256, %s217, [#allocation3], 64, 64, 4
        $region16: #{_encoder_forward.1} parent=11 // pred_fallthru
          _
        // Predicated region
        $region17: #{_encoder_forward.1} parent=11 // pred_check
          %p223 = pneg %p85
        $region18: #{_encoder_forward.1} parent=11 // pred_check_branch
          %225 = sbr.rel (%p223) target = $region20
        $region19: #{_encoder_forward.1} parent=11 // pred_region
          _
        $region20: #{_encoder_forward.1} parent=11 // pred_fallthru
          _
        // Predicated region
        $region21: #{_encoder_forward.1} parent=11 // pred_check
          %p226 = pneg %p106
        $region22: #{_encoder_forward.1} parent=11 // pred_check_branch
          %228 = sbr.rel (%p226) target = $region24
        $region23: #{_encoder_forward.1} parent=11 // pred_region
          _
        $region24: #{_encoder_forward.1} parent=11 // pred_fallthru
          _
        // Predicated region
        $region25: #{_encoder_forward.1} parent=11 // pred_check
          %p229 = pneg %p127
        $region26: #{_encoder_forward.1} parent=11 // pred_check_branch
          %231 = sbr.rel (%p229) target = $region28
        $region27: #{_encoder_forward.1} parent=11 // pred_region
          _
        $region28: #{_encoder_forward.1} parent=11 // pred_fallthru
          _
        // Predicated region
        $region29: #{_encoder_forward.1} parent=11 // pred_check
          %p232 = pneg %p148
        $region30: #{_encoder_forward.1} parent=11 // pred_check_branch
          %234 = sbr.rel (%p232) target = $region32
        $region31: #{_encoder_forward.1} parent=11 // pred_region
          _
        $region32: #{_encoder_forward.1} parent=11 // pred_fallthru
          _
        // Predicated region
        $region33: #{_encoder_forward.1} parent=11 // pred_check
          %p235 = pneg %p169
        $region34: #{_encoder_forward.1} parent=11 // pred_check_branch
          %237 = sbr.rel (%p235) target = $region36
        $region35: #{_encoder_forward.1} parent=11 // pred_region
          _
        $region36: #{_encoder_forward.1} parent=11 // pred_fallthru
          _
      $region12: #{_encoder_forward.1} parent=5 // pred_fallthru
        _
      %p238 = scmp.lt.s32.totalorder %s17, 2
      // Predicated region
      $region37: #{_encoder_forward.1} parent=5 // pred_check
        %p239 = pneg %p238
      $region38: #{_encoder_forward.1} parent=5 // pred_check_branch
        %241 = sbr.rel (%p239) target = $region40
      $region39: #{_encoder_forward.1} parent=5 // pred_region
        // Predicated region
        $region41: #{_encoder_forward.1} parent=39 // pred_check
          %p242 = pneg %p37
        $region42: #{_encoder_forward.1} parent=39 // pred_check_branch
          %244 = sbr.rel (%p242) target = $region44
        $region43: #{_encoder_forward.1} parent=39 // pred_region
          %s245 = smul.u32 16, %s17
          %s246 = ssub.s32 25, %s245
          %p247 = scmp.lt.s32.totalorder %s246, 16
          %s248 = scalar_select %p247, %s246, 16
          %s249 = smul.u32 64, %s248
          %p250 = scmp.lt.s32.totalorder %s245, 24
          %s251 = scalar_select %p250, %s245, 24
          %s252 = smul.addr %s251, 4
          %s253 = scalar_lea.vmem %s0, %s252
          %s254 = smul.u32 16, %s17
          %s255 = ssub.s32 25, %s254
          %p256 = scmp.lt.s32.totalorder %s255, 16
          %s257 = scalar_select %p256, %s255, 16
          %s258 = smul.u32 64, %s257
        $region44: #{_encoder_forward.1} parent=39 // pred_fallthru
          _
      $region40: #{_encoder_forward.1} parent=5 // pred_fallthru
        _
      %p259 = scmp.le.s32.totalorder 1, %s17
      %p260 = scmp.lt.s32.totalorder %s17, 3
      %p261 = pnand %p259, %p260
      %p262 = pneg %p261
      // Predicated region
      $region45: #{_encoder_forward.1} parent=5 // pred_check
        _
      $region46: #{_encoder_forward.1} parent=5 // pred_check_branch
        %264 = sbr.rel (%p261) target = $region48
      $region47: #{_encoder_forward.1} parent=5 // pred_region
        %s265 = ssub.s32 %s17, 1
        // Predicated region
        $region49: #{_encoder_forward.1} parent=47 // pred_check
          %p266 = pneg %p64
        $region50: #{_encoder_forward.1} parent=47 // pred_check_branch
          %268 = sbr.rel (%p266) target = $region52
        $region51: #{_encoder_forward.1} parent=47 // pred_region
          %269 = dma.done [#allocation3], 256
        $region52: #{_encoder_forward.1} parent=47 // pred_fallthru
          _
        %s270 = smul.u32 16, %s22
        %s271 = ssub.s32 25, %s270
        %p272 = scmp.lt.s32.totalorder %s271, 16
        %s273 = scalar_select %p272, %s271, 16
        %s274 = smul.u32 64, %s273
        %p275 = scmp.lt.s32.totalorder %s270, 24
        %s276 = scalar_select %p275, %s270, 24
        %s277 = smul.addr %s276, 4
        %s278 = scalar_lea.vmem %s0, %s277
        %p279 = pneg %p43
        %p280 = pneg %p40
        %p281 = pneg %p64
        %p282 = pneg %p61
        %p283 = pneg %p85
        %p284 = pneg %p82
        %p285 = pneg %p106
        %p286 = pneg %p103
        %p287 = pneg %p127
        %p288 = pneg %p124
        %p289 = pneg %p148
        %p290 = pneg %p145
        %p291 = pneg %p169
        %p292 = pneg %p166
        %p293 = pneg %p195
        %p294 = pneg %p192
        %s295 = sand.u32 %s182, 1
        %s296 = scalar_lea.sflag [#allocation4], %s295
        %s297 = sand.u32 %s182, 1
        %s298 = smul.addr %s297, 128
        %s299 = scalar_lea.vmem [#allocation5], %s298
        %s300 = smul.u32 16, %s22
        %s301 = ssub.s32 25, %s300
        %p302 = scmp.lt.s32.totalorder %s301, 16
        %s303 = scalar_select %p302, %s301, 16
        %s304 = smul.u32 64, %s303
        %p305 = scmp.lt.s32.totalorder %s300, 24
        %s306 = scalar_select %p305, %s300, 24
        %s307 = smul.addr %s306, 4
        %s308 = scalar_lea.vmem %s0, %s307
        %s309 = smul.u32 16, %s22
        %s310 = ssub.s32 25, %s309
        %p311 = scmp.lt.s32.totalorder %s310, 16
        %s312 = scalar_select %p311, %s310, 16
        %s313 = smul.u32 64, %s312
        %s314 = smul.u32 16, %s22
        %s315 = ssub.s32 25, %s314
        %p316 = scmp.lt.s32.totalorder %s315, 16
        %s317 = scalar_select %p316, %s315, 16
        %s318 = smul.u32 128, %s317
        %v320 = vld [vmem:[%s308] sm:$0xf]
        %v321 = vld [vmem:[%s308 + $0x4] sm:$0xf]
        %v322 = vld [vmem:[%s308 + $0x8] sm:$0xf]
        %v323 = vld [vmem:[%s308 + $0xc] sm:$0xf]
        %v324 = vld [vmem:[%s308 + $0x10] sm:$0xf]
        %v325 = vld [vmem:[%s308 + $0x14] sm:$0xf]
        %v326 = vld [vmem:[%s308 + $0x18] sm:$0xf]
        %v327 = vld [vmem:[%s308 + $0x1c] sm:$0xf]
        %v328 = vld [vmem:[%s308 + $0x20] sm:$0xf]
        %v329 = vld [vmem:[%s308 + $0x24] sm:$0xf]
        %v330 = vld [vmem:[%s308 + $0x28] sm:$0xf]
        %v331 = vld [vmem:[%s308 + $0x2c] sm:$0xf]
        %v332 = vld [vmem:[%s308 + $0x30] sm:$0xf]
        %v333 = vld [vmem:[%s308 + $0x34] sm:$0xf]
        %v334 = vld [vmem:[%s308 + $0x38] sm:$0xf]
        %v335 = vld [vmem:[%s308 + $0x3c] sm:$0xf]
        %v336 = vld [vmem:[#allocation2] sm:$0xf]
        %v337 = vld [vmem:[#allocation2 + $0x4] sm:$0xf]
        %v338 = vld [vmem:[#allocation2 + $0x8] sm:$0xf]
        %v339 = vld [vmem:[#allocation2 + $0xc] sm:$0xf]
        %v340 = vld [vmem:[%s2] sm:$0x1]
        %v342 = vlaneseq
        %v343 = vshrl.u32 %v342, 7
        %v344 = vsub.s32 0, %v343
        %v345 = vrot.slane %v340, %v344
        %v363 = vunpack.c.l.b16 %v320
        %v364 = vunpack.c.l.b16 %v321
        %v365 = vunpack.c.l.b16 %v322
        %v366 = vunpack.c.l.b16 %v323
        %v367 = vunpack.c.l.b16 %v324
        %v368 = vunpack.c.l.b16 %v325
        %v369 = vunpack.c.l.b16 %v326
        %v370 = vunpack.c.l.b16 %v327
        %v371 = vunpack.c.l.b16 %v328
        %v372 = vunpack.c.l.b16 %v329
        %v373 = vunpack.c.l.b16 %v330
        %v374 = vunpack.c.l.b16 %v331
        %v375 = vunpack.c.l.b16 %v332
        %v376 = vunpack.c.l.b16 %v333
        %v377 = vunpack.c.l.b16 %v334
        %v378 = vunpack.c.l.b16 %v335
        %v379 = vpack.c.b16 %v364, %v363
        %v380 = vpack.c.b16 %v366, %v365
        %v381 = vpack.c.b16 %v368, %v367
        %v382 = vpack.c.b16 %v370, %v369
        %v383 = vpack.c.b16 %v372, %v371
        %v384 = vpack.c.b16 %v374, %v373
        %v385 = vpack.c.b16 %v376, %v375
        %v386 = vpack.c.b16 %v378, %v377
        %v391 = vunpack.c.l.b16 %v336
        %v392 = vunpack.c.l.b16 %v337
        %v393 = vunpack.c.l.b16 %v338
        %v394 = vunpack.c.l.b16 %v339
        %v395 = vpack.c.b16 %v392, %v391
        %v396 = vpack.c.b16 %v394, %v393
        %vm399 = vcmask 261120
        %v401 = vsel %vm399, %v379, 0
        %v404 = vsel %vm399, %v380, 0
        %v407 = vsel %vm399, %v381, 0
        %v410 = vsel %vm399, %v382, 0
        %v413 = vsel %vm399, %v383, 0
        %v416 = vsel %vm399, %v384, 0
        %v419 = vsel %vm399, %v385, 0
        %v422 = vsel %vm399, %v386, 0
        %424 = vmatprep.subr.bf16.mxu0 0
        %425 = vmatpush1.bf16.msra.mxu0 %v395
        %426 = vmatprep.subr.bf16.mxu0 0
        %427 = vmatpush1.bf16.msra.mxu0 %v396
        %428 = vmatprep.subr.bf16.mxu0 0
        %429 = vmatpush1.bf16.msra.mxu0 0
        %430 = vmatprep.subr.bf16.mxu0 0
        %431 = vmatpush1.bf16.msra.mxu0 0
        %432 = vmatprep.subr.bf16.mxu0 0
        %433 = vmatpush1.bf16.msra.mxu0 0
        %434 = vmatprep.subr.bf16.mxu0 0
        %435 = vmatpush1.bf16.msra.mxu0 0
        %436 = vmatprep.subr.bf16.mxu0 0
        %437 = vmatpush1.bf16.msra.mxu0 0
        %438 = vmatprep.subr.bf16.mxu0 0
        %439 = vmatpush1.bf16.msra.mxu0 0
        %440 = vmatprep.subr.bf16.mxu0 0
        %441 = vmatpush1.bf16.msra.mxu0 0
        %442 = vmatprep.subr.bf16.mxu0 0
        %443 = vmatpush1.bf16.msra.mxu0 0
        %444 = vmatprep.subr.bf16.mxu0 0
        %445 = vmatpush1.bf16.msra.mxu0 0
        %446 = vmatprep.subr.bf16.mxu0 0
        %447 = vmatpush1.bf16.msra.mxu0 0
        %448 = vmatprep.subr.bf16.mxu0 0
        %449 = vmatpush1.bf16.msra.mxu0 0
        %450 = vmatprep.subr.bf16.mxu0 0
        %451 = vmatpush1.bf16.msra.mxu0 0
        %452 = vmatprep.subr.bf16.mxu0 0
        %453 = vmatpush1.bf16.msra.mxu0 0
        %454 = vmatprep.subr.bf16.mxu0 0
        %455 = vmatpush1.bf16.msra.mxu0 0
        %456 = vmatprep.mubr.bf16.mxu0 0
        %457 = vmatmul.mubr.bf16.gmra.mrb[0].mxu0 %v401
        %v458 = vpop.f32.mrb[0].mxu0
        %v459 = vadd.f32 %v345, %v458
        %v460 = vpop.f32.mrb[0].mxu0
        %v461 = vpop.f32.mrb[0].mxu0
        %v462 = vadd.f32 %v345, %v461
        %v463 = vpop.f32.mrb[0].mxu0
        %464 = vmatprep.mubr.bf16.mxu0 0
        %465 = vmatmul.mubr.bf16.gmra.mrb[0].mxu0 %v404
        %v466 = vpop.f32.mrb[0].mxu0
        %v467 = vadd.f32 %v345, %v466
        %v468 = vpop.f32.mrb[0].mxu0
        %v469 = vpop.f32.mrb[0].mxu0
        %v470 = vadd.f32 %v345, %v469
        %v471 = vpop.f32.mrb[0].mxu0
        %472 = vmatprep.mubr.bf16.mxu0 0
        %473 = vmatmul.mubr.bf16.gmra.mrb[0].mxu0 %v407
        %v474 = vpop.f32.mrb[0].mxu0
        %v475 = vadd.f32 %v345, %v474
        %v476 = vpop.f32.mrb[0].mxu0
        %v477 = vpop.f32.mrb[0].mxu0
        %v478 = vadd.f32 %v345, %v477
        %v479 = vpop.f32.mrb[0].mxu0
        %480 = vmatprep.mubr.bf16.mxu0 0
        %481 = vmatmul.mubr.bf16.gmra.mrb[0].mxu0 %v410
        %v482 = vpop.f32.mrb[0].mxu0
        %v483 = vadd.f32 %v345, %v482
        %v484 = vpop.f32.mrb[0].mxu0
        %v485 = vpop.f32.mrb[0].mxu0
        %v486 = vadd.f32 %v345, %v485
        %v487 = vpop.f32.mrb[0].mxu0
        %488 = vmatprep.mubr.bf16.mxu0 0
        %489 = vmatmul.mubr.bf16.gmra.mrb[0].mxu0 %v413
        %v490 = vpop.f32.mrb[0].mxu0
        %v491 = vadd.f32 %v345, %v490
        %v492 = vpop.f32.mrb[0].mxu0
        %v493 = vpop.f32.mrb[0].mxu0
        %v494 = vadd.f32 %v345, %v493
        %v495 = vpop.f32.mrb[0].mxu0
        %496 = vmatprep.mubr.bf16.mxu0 0
        %497 = vmatmul.mubr.bf16.gmra.mrb[0].mxu0 %v416
        %v498 = vpop.f32.mrb[0].mxu0
        %v499 = vadd.f32 %v345, %v498
        %v500 = vpop.f32.mrb[0].mxu0
        %v501 = vpop.f32.mrb[0].mxu0
        %v502 = vadd.f32 %v345, %v501
        %v503 = vpop.f32.mrb[0].mxu0
        %504 = vmatprep.mubr.bf16.mxu0 0
        %505 = vmatmul.mubr.bf16.gmra.mrb[0].mxu0 %v419
        %v506 = vpop.f32.mrb[0].mxu0
        %v507 = vadd.f32 %v345, %v506
        %v508 = vpop.f32.mrb[0].mxu0
        %v509 = vpop.f32.mrb[0].mxu0
        %v510 = vadd.f32 %v345, %v509
        %v511 = vpop.f32.mrb[0].mxu0
        %512 = vmatprep.mubr.bf16.mxu0 0
        %513 = vmatmul.mubr.bf16.gmra.mrb[0].mxu0 %v422
        %v514 = vpop.f32.mrb[0].mxu0
        %v515 = vadd.f32 %v345, %v514
        %v516 = vpop.f32.mrb[0].mxu0
        %v517 = vpop.f32.mrb[0].mxu0
        %v518 = vadd.f32 %v345, %v517
        %v519 = vpop.f32.mrb[0].mxu0
        %520 = vdwg.mxu0
        %v521 = vmax.f32 %v459, 0.0
        %v522 = vmax.f32 %v462, 0.0
        %v523 = vmax.f32 %v467, 0.0
        %v524 = vmax.f32 %v470, 0.0
        %v525 = vmax.f32 %v475, 0.0
        %v526 = vmax.f32 %v478, 0.0
        %v527 = vmax.f32 %v483, 0.0
        %v528 = vmax.f32 %v486, 0.0
        %v529 = vmax.f32 %v491, 0.0
        %v530 = vmax.f32 %v494, 0.0
        %v531 = vmax.f32 %v499, 0.0
        %v532 = vmax.f32 %v502, 0.0
        %v533 = vmax.f32 %v507, 0.0
        %v534 = vmax.f32 %v510, 0.0
        %v535 = vmax.f32 %v515, 0.0
        %v536 = vmax.f32 %v518, 0.0
        %v537 = vpack.c.bf16 %v522, %v521
        %v538 = vpack.c.bf16 %v524, %v523
        %v539 = vpack.c.bf16 %v526, %v525
        %v540 = vpack.c.bf16 %v528, %v527
        %v541 = vpack.c.bf16 %v530, %v529
        %v542 = vpack.c.bf16 %v532, %v531
        %v543 = vpack.c.bf16 %v534, %v533
        %v544 = vpack.c.bf16 %v536, %v535
        %v545 = vld [vmem:[%s3] sm:$0xf]
        %v546 = vld [vmem:[%s3 + $0x4] sm:$0xf]
        %v547 = vld [vmem:[%s3 + $0x8] sm:$0xf]
        %v548 = vld [vmem:[%s3 + $0xc] sm:$0xf]
        %v549 = vld [vmem:[%s3 + $0x10] sm:$0xf]
        %v550 = vld [vmem:[%s3 + $0x14] sm:$0xf]
        %v551 = vld [vmem:[%s3 + $0x18] sm:$0xf]
        %v552 = vld [vmem:[%s3 + $0x1c] sm:$0xf]
        %v553 = vld [vmem:[%s3 + $0x20] sm:$0xf]
        %v554 = vld [vmem:[%s3 + $0x24] sm:$0xf]
        %v555 = vld [vmem:[%s3 + $0x28] sm:$0xf]
        %v556 = vld [vmem:[%s3 + $0x2c] sm:$0xf]
        %v557 = vld [vmem:[%s3 + $0x30] sm:$0xf]
        %v558 = vld [vmem:[%s3 + $0x34] sm:$0xf]
        %v559 = vld [vmem:[%s3 + $0x38] sm:$0xf]
        %v560 = vld [vmem:[%s3 + $0x3c] sm:$0xf]
        %v561 = vld [vmem:[%s4] sm:$0x1]
        %v563 = vlaneseq
        %v564 = vshrl.u32 %v563, 7
        %v565 = vsub.s32 0, %v564
        %v566 = vrot.slane %v561, %v565
        %v584 = vunpack.c.l.b16 %v545
        %v585 = vunpack.c.l.b16 %v546
        %v586 = vunpack.c.l.b16 %v547
        %v587 = vunpack.c.l.b16 %v548
        %v588 = vunpack.c.l.b16 %v549
        %v589 = vunpack.c.l.b16 %v550
        %v590 = vunpack.c.l.b16 %v551
        %v591 = vunpack.c.l.b16 %v552
        %v592 = vunpack.c.l.b16 %v553
        %v593 = vunpack.c.l.b16 %v554
        %v594 = vunpack.c.l.b16 %v555
        %v595 = vunpack.c.l.b16 %v556
        %v596 = vunpack.c.l.b16 %v557
        %v597 = vunpack.c.l.b16 %v558
        %v598 = vunpack.c.l.b16 %v559
        %v599 = vunpack.c.l.b16 %v560
        %v600 = vpack.c.b16 %v585, %v584
        %v601 = vpack.c.b16 %v587, %v586
        %v602 = vpack.c.b16 %v589, %v588
        %v603 = vpack.c.b16 %v591, %v590
        %v604 = vpack.c.b16 %v593, %v592
        %v605 = vpack.c.b16 %v595, %v594
        %v606 = vpack.c.b16 %v597, %v596
        %v607 = vpack.c.b16 %v599, %v598
        %616 = vmatprep.subr.bf16.mxu0 0
        %617 = vmatpush1.bf16.msra.mxu0 %v600
        %618 = vmatprep.subr.bf16.mxu0 0
        %619 = vmatpush1.bf16.msra.mxu0 %v601
        %620 = vmatprep.subr.bf16.mxu0 0
        %621 = vmatpush1.bf16.msra.mxu0 %v602
        %622 = vmatprep.subr.bf16.mxu0 0
        %623 = vmatpush1.bf16.msra.mxu0 %v603
        %624 = vmatprep.subr.bf16.mxu0 0
        %625 = vmatpush1.bf16.msra.mxu0 %v604
        %626 = vmatprep.subr.bf16.mxu0 0
        %627 = vmatpush1.bf16.msra.mxu0 %v605
        %628 = vmatprep.subr.bf16.mxu0 0
        %629 = vmatpush1.bf16.msra.mxu0 %v606
        %630 = vmatprep.subr.bf16.mxu0 0
        %631 = vmatpush1.bf16.msra.mxu0 %v607
        %632 = vmatprep.subr.bf16.mxu0 0
        %633 = vmatpush1.bf16.msra.mxu0 0
        %634 = vmatprep.subr.bf16.mxu0 0
        %635 = vmatpush1.bf16.msra.mxu0 0
        %636 = vmatprep.subr.bf16.mxu0 0
        %637 = vmatpush1.bf16.msra.mxu0 0
        %638 = vmatprep.subr.bf16.mxu0 0
        %639 = vmatpush1.bf16.msra.mxu0 0
        %640 = vmatprep.subr.bf16.mxu0 0
        %641 = vmatpush1.bf16.msra.mxu0 0
        %642 = vmatprep.subr.bf16.mxu0 0
        %643 = vmatpush1.bf16.msra.mxu0 0
        %644 = vmatprep.subr.bf16.mxu0 0
        %645 = vmatpush1.bf16.msra.mxu0 0
        %646 = vmatprep.subr.bf16.mxu0 0
        %647 = vmatpush1.bf16.msra.mxu0 0
        %648 = vmatprep.mubr.bf16.mxu0 0
        %649 = vmatmul.mubr.bf16.gmra.mrb[0].mxu0 %v537
        %v650 = vpop.f32.mrb[0].mxu0
        %v651 = vadd.f32 %v566, %v650
        %v652 = vpop.f32.mrb[0].mxu0
        %v653 = vpop.f32.mrb[0].mxu0
        %v654 = vadd.f32 %v566, %v653
        %v655 = vpop.f32.mrb[0].mxu0
        %656 = vmatprep.mubr.bf16.mxu0 0
        %657 = vmatmul.mubr.bf16.gmra.mrb[0].mxu0 %v538
        %v658 = vpop.f32.mrb[0].mxu0
        %v659 = vadd.f32 %v566, %v658
        %v660 = vpop.f32.mrb[0].mxu0
        %v661 = vpop.f32.mrb[0].mxu0
        %v662 = vadd.f32 %v566, %v661
        %v663 = vpop.f32.mrb[0].mxu0
        %664 = vmatprep.mubr.bf16.mxu0 0
        %665 = vmatmul.mubr.bf16.gmra.mrb[0].mxu0 %v539
        %v666 = vpop.f32.mrb[0].mxu0
        %v667 = vadd.f32 %v566, %v666
        %v668 = vpop.f32.mrb[0].mxu0
        %v669 = vpop.f32.mrb[0].mxu0
        %v670 = vadd.f32 %v566, %v669
        %v671 = vpop.f32.mrb[0].mxu0
        %672 = vmatprep.mubr.bf16.mxu0 0
        %673 = vmatmul.mubr.bf16.gmra.mrb[0].mxu0 %v540
        %v674 = vpop.f32.mrb[0].mxu0
        %v675 = vadd.f32 %v566, %v674
        %v676 = vpop.f32.mrb[0].mxu0
        %v677 = vpop.f32.mrb[0].mxu0
        %v678 = vadd.f32 %v566, %v677
        %v679 = vpop.f32.mrb[0].mxu0
        %680 = vmatprep.mubr.bf16.mxu0 0
        %681 = vmatmul.mubr.bf16.gmra.mrb[0].mxu0 %v541
        %v682 = vpop.f32.mrb[0].mxu0
        %v683 = vadd.f32 %v566, %v682
        %v684 = vpop.f32.mrb[0].mxu0
        %v685 = vpop.f32.mrb[0].mxu0
        %v686 = vadd.f32 %v566, %v685
        %v687 = vpop.f32.mrb[0].mxu0
        %688 = vmatprep.mubr.bf16.mxu0 0
        %689 = vmatmul.mubr.bf16.gmra.mrb[0].mxu0 %v542
        %v690 = vpop.f32.mrb[0].mxu0
        %v691 = vadd.f32 %v566, %v690
        %v692 = vpop.f32.mrb[0].mxu0
        %v693 = vpop.f32.mrb[0].mxu0
        %v694 = vadd.f32 %v566, %v693
        %v695 = vpop.f32.mrb[0].mxu0
        %696 = vmatprep.mubr.bf16.mxu0 0
        %697 = vmatmul.mubr.bf16.gmra.mrb[0].mxu0 %v543
        %v698 = vpop.f32.mrb[0].mxu0
        %v699 = vadd.f32 %v566, %v698
        %v700 = vpop.f32.mrb[0].mxu0
        %v701 = vpop.f32.mrb[0].mxu0
        %v702 = vadd.f32 %v566, %v701
        %v703 = vpop.f32.mrb[0].mxu0
        %704 = vmatprep.mubr.bf16.mxu0 0
        %705 = vmatmul.mubr.bf16.gmra.mrb[0].mxu0 %v544
        %v706 = vpop.f32.mrb[0].mxu0
        %v707 = vadd.f32 %v566, %v706
        %v708 = vpop.f32.mrb[0].mxu0
        %v709 = vpop.f32.mrb[0].mxu0
        %v710 = vadd.f32 %v566, %v709
        %v711 = vpop.f32.mrb[0].mxu0
        %712 = vdwg.mxu0
        %v713 = vmax.f32 %v651, 0.0
        %v714 = vmax.f32 %v654, 0.0
        %v715 = vmax.f32 %v659, 0.0
        %v716 = vmax.f32 %v662, 0.0
        %v717 = vmax.f32 %v667, 0.0
        %v718 = vmax.f32 %v670, 0.0
        %v719 = vmax.f32 %v675, 0.0
        %v720 = vmax.f32 %v678, 0.0
        %v721 = vmax.f32 %v683, 0.0
        %v722 = vmax.f32 %v686, 0.0
        %v723 = vmax.f32 %v691, 0.0
        %v724 = vmax.f32 %v694, 0.0
        %v725 = vmax.f32 %v699, 0.0
        %v726 = vmax.f32 %v702, 0.0
        %v727 = vmax.f32 %v707, 0.0
        %v728 = vmax.f32 %v710, 0.0
        %v729 = vpack.c.bf16 %v714, %v713
        %v730 = vpack.c.bf16 %v716, %v715
        %v731 = vpack.c.bf16 %v718, %v717
        %v732 = vpack.c.bf16 %v720, %v719
        %v733 = vpack.c.bf16 %v722, %v721
        %v734 = vpack.c.bf16 %v724, %v723
        %v735 = vpack.c.bf16 %v726, %v725
        %v736 = vpack.c.bf16 %v728, %v727
        %v737 = vld [vmem:[%s5] sm:$0xf]
        %v738 = vld [vmem:[%s5 + $0x4] sm:$0xf]
        %v739 = vld [vmem:[%s5 + $0x8] sm:$0xf]
        %v740 = vld [vmem:[%s5 + $0xc] sm:$0xf]
        %v741 = vld [vmem:[%s5 + $0x10] sm:$0xf]
        %v742 = vld [vmem:[%s5 + $0x14] sm:$0xf]
        %v743 = vld [vmem:[%s5 + $0x18] sm:$0xf]
        %v744 = vld [vmem:[%s5 + $0x1c] sm:$0xf]
        %v745 = vld [vmem:[%s5 + $0x20] sm:$0xf]
        %v746 = vld [vmem:[%s5 + $0x24] sm:$0xf]
        %v747 = vld [vmem:[%s5 + $0x28] sm:$0xf]
        %v748 = vld [vmem:[%s5 + $0x2c] sm:$0xf]
        %v749 = vld [vmem:[%s5 + $0x30] sm:$0xf]
        %v750 = vld [vmem:[%s5 + $0x34] sm:$0xf]
        %v751 = vld [vmem:[%s5 + $0x38] sm:$0xf]
        %v752 = vld [vmem:[%s5 + $0x3c] sm:$0xf]
        %v753 = vld [vmem:[%s6] sm:$0x1]
        %v755 = vlaneseq
        %v756 = vshrl.u32 %v755, 7
        %v757 = vsub.s32 0, %v756
        %v758 = vrot.slane %v753, %v757
        %v776 = vunpack.c.l.b16 %v737
        %v777 = vunpack.c.l.b16 %v738
        %v778 = vunpack.c.l.b16 %v739
        %v779 = vunpack.c.l.b16 %v740
        %v780 = vunpack.c.l.b16 %v741
        %v781 = vunpack.c.l.b16 %v742
        %v782 = vunpack.c.l.b16 %v743
        %v783 = vunpack.c.l.b16 %v744
        %v784 = vunpack.c.l.b16 %v745
        %v785 = vunpack.c.l.b16 %v746
        %v786 = vunpack.c.l.b16 %v747
        %v787 = vunpack.c.l.b16 %v748
        %v788 = vunpack.c.l.b16 %v749
        %v789 = vunpack.c.l.b16 %v750
        %v790 = vunpack.c.l.b16 %v751
        %v791 = vunpack.c.l.b16 %v752
        %v792 = vpack.c.b16 %v777, %v776
        %v793 = vpack.c.b16 %v779, %v778
        %v794 = vpack.c.b16 %v781, %v780
        %v795 = vpack.c.b16 %v783, %v782
        %v796 = vpack.c.b16 %v785, %v784
        %v797 = vpack.c.b16 %v787, %v786
        %v798 = vpack.c.b16 %v789, %v788
        %v799 = vpack.c.b16 %v791, %v790
        %808 = vmatprep.subr.bf16.mxu0 0
        %809 = vmatpush1.bf16.msra.mxu0 %v792
        %810 = vmatprep.subr.bf16.mxu0 0
        %811 = vmatpush1.bf16.msra.mxu0 %v793
        %812 = vmatprep.subr.bf16.mxu0 0
        %813 = vmatpush1.bf16.msra.mxu0 %v794
        %814 = vmatprep.subr.bf16.mxu0 0
        %815 = vmatpush1.bf16.msra.mxu0 %v795
        %816 = vmatprep.subr.bf16.mxu0 0
        %817 = vmatpush1.bf16.msra.mxu0 %v796
        %818 = vmatprep.subr.bf16.mxu0 0
        %819 = vmatpush1.bf16.msra.mxu0 %v797
        %820 = vmatprep.subr.bf16.mxu0 0
        %821 = vmatpush1.bf16.msra.mxu0 %v798
        %822 = vmatprep.subr.bf16.mxu0 0
        %823 = vmatpush1.bf16.msra.mxu0 %v799
        %824 = vmatprep.subr.bf16.mxu0 0
        %825 = vmatpush1.bf16.msra.mxu0 0
        %826 = vmatprep.subr.bf16.mxu0 0
        %827 = vmatpush1.bf16.msra.mxu0 0
        %828 = vmatprep.subr.bf16.mxu0 0
        %829 = vmatpush1.bf16.msra.mxu0 0
        %830 = vmatprep.subr.bf16.mxu0 0
        %831 = vmatpush1.bf16.msra.mxu0 0
        %832 = vmatprep.subr.bf16.mxu0 0
        %833 = vmatpush1.bf16.msra.mxu0 0
        %834 = vmatprep.subr.bf16.mxu0 0
        %835 = vmatpush1.bf16.msra.mxu0 0
        %836 = vmatprep.subr.bf16.mxu0 0
        %837 = vmatpush1.bf16.msra.mxu0 0
        %838 = vmatprep.subr.bf16.mxu0 0
        %839 = vmatpush1.bf16.msra.mxu0 0
        %840 = vmatprep.mubr.bf16.mxu0 0
        %841 = vmatmul.mubr.bf16.gmra.mrb[0].mxu0 %v729
        %v842 = vpop.f32.mrb[0].mxu0
        %v843 = vadd.f32 %v758, %v842
        %v844 = vpop.f32.mrb[0].mxu0
        %v845 = vpop.f32.mrb[0].mxu0
        %v846 = vadd.f32 %v758, %v845
        %v847 = vpop.f32.mrb[0].mxu0
        %848 = vmatprep.mubr.bf16.mxu0 0
        %849 = vmatmul.mubr.bf16.gmra.mrb[0].mxu0 %v730
        %v850 = vpop.f32.mrb[0].mxu0
        %v851 = vadd.f32 %v758, %v850
        %v852 = vpop.f32.mrb[0].mxu0
        %v853 = vpop.f32.mrb[0].mxu0
        %v854 = vadd.f32 %v758, %v853
        %v855 = vpop.f32.mrb[0].mxu0
        %856 = vmatprep.mubr.bf16.mxu0 0
        %857 = vmatmul.mubr.bf16.gmra.mrb[0].mxu0 %v731
        %v858 = vpop.f32.mrb[0].mxu0
        %v859 = vadd.f32 %v758, %v858
        %v860 = vpop.f32.mrb[0].mxu0
        %v861 = vpop.f32.mrb[0].mxu0
        %v862 = vadd.f32 %v758, %v861
        %v863 = vpop.f32.mrb[0].mxu0
        %864 = vmatprep.mubr.bf16.mxu0 0
        %865 = vmatmul.mubr.bf16.gmra.mrb[0].mxu0 %v732
        %v866 = vpop.f32.mrb[0].mxu0
        %v867 = vadd.f32 %v758, %v866
        %v868 = vpop.f32.mrb[0].mxu0
        %v869 = vpop.f32.mrb[0].mxu0
        %v870 = vadd.f32 %v758, %v869
        %v871 = vpop.f32.mrb[0].mxu0
        %872 = vmatprep.mubr.bf16.mxu0 0
        %873 = vmatmul.mubr.bf16.gmra.mrb[0].mxu0 %v733
        %v874 = vpop.f32.mrb[0].mxu0
        %v875 = vadd.f32 %v758, %v874
        %v876 = vpop.f32.mrb[0].mxu0
        %v877 = vpop.f32.mrb[0].mxu0
        %v878 = vadd.f32 %v758, %v877
        %v879 = vpop.f32.mrb[0].mxu0
        %880 = vmatprep.mubr.bf16.mxu0 0
        %881 = vmatmul.mubr.bf16.gmra.mrb[0].mxu0 %v734
        %v882 = vpop.f32.mrb[0].mxu0
        %v883 = vadd.f32 %v758, %v882
        %v884 = vpop.f32.mrb[0].mxu0
        %v885 = vpop.f32.mrb[0].mxu0
        %v886 = vadd.f32 %v758, %v885
        %v887 = vpop.f32.mrb[0].mxu0
        %888 = vmatprep.mubr.bf16.mxu0 0
        %889 = vmatmul.mubr.bf16.gmra.mrb[0].mxu0 %v735
        %v890 = vpop.f32.mrb[0].mxu0
        %v891 = vadd.f32 %v758, %v890
        %v892 = vpop.f32.mrb[0].mxu0
        %v893 = vpop.f32.mrb[0].mxu0
        %v894 = vadd.f32 %v758, %v893
        %v895 = vpop.f32.mrb[0].mxu0
        %896 = vmatprep.mubr.bf16.mxu0 0
        %897 = vmatmul.mubr.bf16.gmra.mrb[0].mxu0 %v736
        %v898 = vpop.f32.mrb[0].mxu0
        %v899 = vadd.f32 %v758, %v898
        %v900 = vpop.f32.mrb[0].mxu0
        %v901 = vpop.f32.mrb[0].mxu0
        %v902 = vadd.f32 %v758, %v901
        %v903 = vpop.f32.mrb[0].mxu0
        %904 = vdwg.mxu0
        %905 = vst [vmem:[%s299] sm:$0xff] %v843
        %906 = vst [vmem:[%s299 + $0x8] sm:$0xff] %v846
        %907 = vst [vmem:[%s299 + $0x10] sm:$0xff] %v851
        %908 = vst [vmem:[%s299 + $0x18] sm:$0xff] %v854
        %909 = vst [vmem:[%s299 + $0x20] sm:$0xff] %v859
        %910 = vst [vmem:[%s299 + $0x28] sm:$0xff] %v862
        %911 = vst [vmem:[%s299 + $0x30] sm:$0xff] %v867
        %912 = vst [vmem:[%s299 + $0x38] sm:$0xff] %v870
        %913 = vst [vmem:[%s299 + $0x40] sm:$0xff] %v875
        %914 = vst [vmem:[%s299 + $0x48] sm:$0xff] %v878
        %915 = vst [vmem:[%s299 + $0x50] sm:$0xff] %v883
        %916 = vst [vmem:[%s299 + $0x58] sm:$0xff] %v886
        %917 = vst [vmem:[%s299 + $0x60] sm:$0xff] %v891
        %918 = vst [vmem:[%s299 + $0x68] sm:$0xff] %v894
        %919 = vst [vmem:[%s299 + $0x70] sm:$0xff] %v899
        %920 = vst [vmem:[%s299 + $0x78] sm:$0xff] %v902
        %s921 = sand.u32 %s182, 1
        %s922 = scalar_lea.sflag [#allocation4], %s921
        %s923 = sand.u32 %s182, 1
        %s924 = smul.addr %s923, 128
        %s925 = scalar_lea.vmem [#allocation5], %s924
        // Predicated region
        $region53: #{_encoder_forward.1} parent=47 // pred_check
          %p926 = pneg %p192
        $region54: #{_encoder_forward.1} parent=47 // pred_check_branch
          %928 = sbr.rel (%p926) target = $region56
        $region55: #{_encoder_forward.1} parent=47 // pred_region
          %s929 = smul.u32 16, %s22
          %s930 = ssub.s32 25, %s929
          %p931 = scmp.lt.s32.totalorder %s930, 16
          %s932 = scalar_select %p931, %s930, 16
          %s933 = smul.u32 128, %s932
          %s935 = ssub.s32 2048, %s933
          %936 = vsyncadd %s922, %s935
          %p937 = scmp.ne.s32.totalorder 0, %s933
          %s938 = smul.addr %s929, 128
          %s939 = scalar_lea.hbm %s7, %s938
          %s940 = smul.u32 8, %s932
          %s941 = sshll.u32 %s925, 4
          %s942 = int_to_ptr.vmem [resolvable:$true] %s941
          %s943 = sshll.u32 %s940, 4
          %947 = dma.vmem_to_hbm [thread:$0]  (%p937), %s942, %s943, %s939, %s922, 128, 128, 8
        $region56: #{_encoder_forward.1} parent=47 // pred_fallthru
          _
      $region48: #{_encoder_forward.1} parent=5 // pred_fallthru
        _
      %p948 = scmp.le.s32.totalorder 2, %s17
      // Predicated region
      $region57: #{_encoder_forward.1} parent=5 // pred_check
        %p949 = pneg %p948
      $region58: #{_encoder_forward.1} parent=5 // pred_check_branch
        %951 = sbr.rel (%p949) target = $region60
      $region59: #{_encoder_forward.1} parent=5 // pred_region
        %s952 = ssub.s32 %s17, 2
        // Predicated region
        $region61: #{_encoder_forward.1} parent=59 // pred_check
          %p953 = pneg %p198
        $region62: #{_encoder_forward.1} parent=59 // pred_check_branch
          %955 = sbr.rel (%p953) target = $region64
        $region63: #{_encoder_forward.1} parent=59 // pred_region
          %s956 = sand.u32 %s183, 1
          %s957 = scalar_lea.sflag [#allocation4], %s956
          %s958 = sand.u32 %s183, 1
          %s959 = smul.addr %s958, 128
          %s960 = scalar_lea.vmem [#allocation5], %s959
          %961 = dma.done %s957, 2048
        $region64: #{_encoder_forward.1} parent=59 // pred_fallthru
          _
      $region60: #{_encoder_forward.1} parent=5 // pred_fallthru
        _
    $region6: #{_encoder_forward.1} parent=1 // loop_footer
      %s21 = sadd.s32 1, %s17
    $region7: #{_encoder_forward.1} parent=1 // loop_footer_branch
      %16 = sbr.rel target = $region3
    $region8: #{_encoder_forward.1} parent=1 // loop_exit
      _
    %962 = vsyncpa [#allocation3], 1
    %s963 = scalar_lea.sflag [#allocation3], 1
    %964 = vsyncpa %s963, 1
    %965 = vsyncpa [#allocation4], 1
    %s966 = scalar_lea.sflag [#allocation4], 1
    %967 = vsyncpa %s966, 1

// kernel: _encoder_forward.1
$region0: #{_encoder_forward.1}
  #allocation0 [shape = 'u32[]', space=smem, size = 0x4, offset = 0x4, fixed_abs, tag = 'smem constant byte address 0x4 - core index']
  #allocation1 [shape = 'u32[144,128]{1,0:T(1,128)}', space=vmem, size = 0x12000, scoped, tag = 'internal scratch']
  %s0 = inlined_call_operand.vmem [shape: bf16[200,32], index: 0, kind: input, shape index: {}]
  %s1 = inlined_call_operand.hbm [shape: bf16[32,128], index: 1, kind: input, shape index: {}]
  %s2 = inlined_call_operand.vmem [shape: f32[1,128], index: 2, kind: input, shape index: {}]
  %s3 = inlined_call_operand.vmem [shape: bf16[128,128], index: 3, kind: input, shape index: {}]
  %s4 = inlined_call_operand.vmem [shape: f32[1,128], index: 4, kind: input, shape index: {}]
  %s5 = inlined_call_operand.vmem [shape: bf16[128,128], index: 5, kind: input, shape index: {}]
  %s6 = inlined_call_operand.vmem [shape: f32[1,128], index: 6, kind: input, shape index: {}]
  %s7 = inlined_call_operand.hbm [shape: f32[200,128], index: 7, kind: output, shape index: {}]
  %s8 = sld [smem:[#allocation0]]
  $region65: #{_encoder_forward.1} parent=0
    _
  %s10 = ssub.s32 1, %s8
  %s11 = scalar_select 0, %s10, %s8
  $region1: #{_encoder_forward.1} parent=0
    #allocation2 [shape = 'u8[8192]{0}', space=vmem, size = 0x2000, scoped, tag = 'input window, operand 1, single buffered']
    #allocation3 [shape = 's32[2]{0}', space=sflag, size = 0x8, scoped, tag = 'scoped memory for _encoder_forward.1']
    #allocation4 [shape = 's32[2]{0}', space=sflag, size = 0x8, scoped, tag = 'scoped memory for _encoder_forward.1']
    #allocation5 [shape = 'u8[131072]{0}', space=vmem, size = 0x20000, scoped, tag = 'output window, operand 0']
    %12 = vsyncpa [#allocation3], 0
    %13 = vsyncpa [#allocation4], 0
    %s14 = scalar_lea.sflag [#allocation4], 1
    %15 = vsyncpa %s14, 0
    loop: start=0, step=1, limit=4
    $region2: #{_encoder_forward.1} parent=1 // loop_pre_header
      _
    $region3: #{_encoder_forward.1} parent=1 // loop_header
      %s17 = sphi 0, %s21
      %p18 = scmp.ge.s32.totalorder %s17, 4
      %s27 = sphi 0, %s29
      %s30 = sphi 0, %s27
      %s31 = sphi 0, %s30
      %s47 = sphi 0, %s31
      %s51 = sphi 0, %s51
      %s53 = sphi 0, %s51
      %s54 = sphi 0, %s53
      %s68 = sphi 0, %s54
      %s72 = sphi 0, %s72
      %s74 = sphi 0, %s72
      %s75 = sphi 0, %s74
      %s89 = sphi 0, %s75
      %s93 = sphi 0, %s93
      %s95 = sphi 0, %s93
      %s96 = sphi 0, %s95
      %s110 = sphi 0, %s96
      %s114 = sphi 0, %s114
      %s116 = sphi 0, %s114
      %s117 = sphi 0, %s116
      %s131 = sphi 0, %s117
      %s135 = sphi 0, %s135
      %s137 = sphi 0, %s135
      %s138 = sphi 0, %s137
      %s152 = sphi 0, %s138
      %s156 = sphi 0, %s156
      %s158 = sphi 0, %s156
      %s159 = sphi 0, %s158
      %s173 = sphi 0, %s159
      %s179 = sphi 0, %s181
      %s182 = sphi 0, %s179
      %s183 = sphi 0, %s182
      %s199 = sphi 0, %s183
    $region4: #{_encoder_forward.1} parent=1 // loop_header_branch
      %20 = sbr.rel (%p18) target = $region8
    $region5: #{_encoder_forward.1} parent=1 // loop_body
      %s22 = ssub.s32 %s17, 1
      %s23 = ssub.s32 %s17, 2
      %s24 = sadd.s32 %s17, 1
      %s25 = ssub.s32 %s17, %s24
      %p26 = scmp.eq.s32.totalorder %s25, 0
      %s28 = sadd.s32 %s27, 1
      %s29 = scalar_select %p26, %s27, %s28
      %p32 = pneg %p26
      %p33 = scmp.eq.s32.totalorder %s17, 1
      %p34 = por %p32, %p33
      %p35 = scmp.ne.s32.totalorder %s27, %s30
      %p36 = scmp.eq.s32.totalorder %s17, 0
      %p37 = por %p35, %p36
      %p38 = scmp.ne.s32.totalorder %s27, %s30
      %p39 = scmp.eq.s32.totalorder %s22, 1
      %p40 = por %p38, %p39
      %p41 = scmp.ne.s32.totalorder %s30, %s31
      %p42 = scmp.eq.s32.totalorder %s22, 0
      %p43 = por %p41, %p42
      %p44 = scmp.ne.s32.totalorder %s30, %s31
      %p45 = scmp.eq.s32.totalorder %s23, 1
      %p46 = por %p44, %p45
      %p48 = scmp.ne.s32.totalorder %s31, %s47
      %p49 = scmp.eq.s32.totalorder %s23, 0
      %p50 = por %p48, %p49
      %s52 = sadd.s32 %s51, 1
      %p55 = scmp.eq.s32.totalorder %s17, 1
      %p56 = scmp.ne.s32.totalorder %s51, %s53
      %p57 = scmp.eq.s32.totalorder %s17, 0
      %p58 = por %p56, %p57
      %p59 = scmp.ne.s32.totalorder %s51, %s53
      %p60 = scmp.eq.s32.totalorder %s22, 1
      %p61 = por %p59, %p60
      %p62 = scmp.ne.s32.totalorder %s53, %s54
      %p63 = scmp.eq.s32.totalorder %s22, 0
      %p64 = por %p62, %p63
      %p65 = scmp.ne.s32.totalorder %s53, %s54
      %p66 = scmp.eq.s32.totalorder %s23, 1
      %p67 = por %p65, %p66
      %p69 = scmp.ne.s32.totalorder %s54, %s68
      %p70 = scmp.eq.s32.totalorder %s23, 0
      %p71 = por %p69, %p70
      %s73 = sadd.s32 %s72, 1
      %p76 = scmp.eq.s32.totalorder %s17, 1
      %p77 = scmp.ne.s32.totalorder %s72, %s74
      %p78 = scmp.eq.s32.totalorder %s17, 0
      %p79 = por %p77, %p78
      %p80 = scmp.ne.s32.totalorder %s72, %s74
      %p81 = scmp.eq.s32.totalorder %s22, 1
      %p82 = por %p80, %p81
      %p83 = scmp.ne.s32.totalorder %s74, %s75
      %p84 = scmp.eq.s32.totalorder %s22, 0
      %p85 = por %p83, %p84
      %p86 = scmp.ne.s32.totalorder %s74, %s75
      %p87 = scmp.eq.s32.totalorder %s23, 1
      %p88 = por %p86, %p87
      %p90 = scmp.ne.s32.totalorder %s75, %s89
      %p91 = scmp.eq.s32.totalorder %s23, 0
      %p92 = por %p90, %p91
      %s94 = sadd.s32 %s93, 1
      %p97 = scmp.eq.s32.totalorder %s17, 1
      %p98 = scmp.ne.s32.totalorder %s93, %s95
      %p99 = scmp.eq.s32.totalorder %s17, 0
      %p100 = por %p98, %p99
      %p101 = scmp.ne.s32.totalorder %s93, %s95
      %p102 = scmp.eq.s32.totalorder %s22, 1
      %p103 = por %p101, %p102
      %p104 = scmp.ne.s32.totalorder %s95, %s96
      %p105 = scmp.eq.s32.totalorder %s22, 0
      %p106 = por %p104, %p105
      %p107 = scmp.ne.s32.totalorder %s95, %s96
      %p108 = scmp.eq.s32.totalorder %s23, 1
      %p109 = por %p107, %p108
      %p111 = scmp.ne.s32.totalorder %s96, %s110
      %p112 = scmp.eq.s32.totalorder %s23, 0
      %p113 = por %p111, %p112
      %s115 = sadd.s32 %s114, 1
      %p118 = scmp.eq.s32.totalorder %s17, 1
      %p119 = scmp.ne.s32.totalorder %s114, %s116
      %p120 = scmp.eq.s32.totalorder %s17, 0
      %p121 = por %p119, %p120
      %p122 = scmp.ne.s32.totalorder %s114, %s116
      %p123 = scmp.eq.s32.totalorder %s22, 1
      %p124 = por %p122, %p123
      %p125 = scmp.ne.s32.totalorder %s116, %s117
      %p126 = scmp.eq.s32.totalorder %s22, 0
      %p127 = por %p125, %p126
      %p128 = scmp.ne.s32.totalorder %s116, %s117
      %p129 = scmp.eq.s32.totalorder %s23, 1
      %p130 = por %p128, %p129
      %p132 = scmp.ne.s32.totalorder %s117, %s131
      %p133 = scmp.eq.s32.totalorder %s23, 0
      %p134 = por %p132, %p133
      %s136 = sadd.s32 %s135, 1
      %p139 = scmp.eq.s32.totalorder %s17, 1
      %p140 = scmp.ne.s32.totalorder %s135, %s137
      %p141 = scmp.eq.s32.totalorder %s17, 0
      %p142 = por %p140, %p141
      %p143 = scmp.ne.s32.totalorder %s135, %s137
      %p144 = scmp.eq.s32.totalorder %s22, 1
      %p145 = por %p143, %p144
      %p146 = scmp.ne.s32.totalorder %s137, %s138
      %p147 = scmp.eq.s32.totalorder %s22, 0
      %p148 = por %p146, %p147
      %p149 = scmp.ne.s32.totalorder %s137, %s138
      %p150 = scmp.eq.s32.totalorder %s23, 1
      %p151 = por %p149, %p150
      %p153 = scmp.ne.s32.totalorder %s138, %s152
      %p154 = scmp.eq.s32.totalorder %s23, 0
      %p155 = por %p153, %p154
      %s157 = sadd.s32 %s156, 1
      %p160 = scmp.eq.s32.totalorder %s17, 1
      %p161 = scmp.ne.s32.totalorder %s156, %s158
      %p162 = scmp.eq.s32.totalorder %s17, 0
      %p163 = por %p161, %p162
      %p164 = scmp.ne.s32.totalorder %s156, %s158
      %p165 = scmp.eq.s32.totalorder %s22, 1
      %p166 = por %p164, %p165
      %p167 = scmp.ne.s32.totalorder %s158, %s159
      %p168 = scmp.eq.s32.totalorder %s22, 0
      %p169 = por %p167, %p168
      %p170 = scmp.ne.s32.totalorder %s158, %s159
      %p171 = scmp.eq.s32.totalorder %s23, 1
      %p172 = por %p170, %p171
      %p174 = scmp.ne.s32.totalorder %s159, %s173
      %p175 = scmp.eq.s32.totalorder %s23, 0
      %p176 = por %p174, %p175
      %s177 = ssub.s32 %s17, %s24
      %p178 = scmp.eq.s32.totalorder %s177, 0
      %s180 = sadd.s32 %s179, 1
      %s181 = scalar_select %p178, %s179, %s180
      %p184 = pneg %p178
      %p185 = scmp.eq.s32.totalorder %s17, 1
      %p186 = por %p184, %p185
      %p187 = scmp.ne.s32.totalorder %s179, %s182
      %p188 = scmp.eq.s32.totalorder %s17, 0
      %p189 = por %p187, %p188
      %p190 = scmp.ne.s32.totalorder %s179, %s182
      %p191 = scmp.eq.s32.totalorder %s22, 1
      %p192 = por %p190, %p191
      %p193 = scmp.ne.s32.totalorder %s182, %s183
      %p194 = scmp.eq.s32.totalorder %s22, 0
      %p195 = por %p193, %p194
      %p196 = scmp.ne.s32.totalorder %s182, %s183
      %p197 = scmp.eq.s32.totalorder %s23, 1
      %p198 = por %p196, %p197
      %p200 = scmp.ne.s32.totalorder %s183, %s199
      %p201 = scmp.eq.s32.totalorder %s23, 0
      %p202 = por %p200, %p201
      %p203 = scmp.le.s32.totalorder 1, %s17
      %p204 = scmp.lt.s32.totalorder %s17, 3
      %p205 = pnand %p203, %p204
      %p206 = pneg %p205
      // Predicated region
      $region9: #{_encoder_forward.1} parent=5 // pred_check
        _
      $region10: #{_encoder_forward.1} parent=5 // pred_check_branch
        %208 = sbr.rel (%p205) target = $region12
      $region11: #{_encoder_forward.1} parent=5 // pred_region
        %s209 = ssub.s32 %s17, 1
        // Predicated region
        $region13: #{_encoder_forward.1} parent=11 // pred_check
          %p210 = pneg %p64
        $region14: #{_encoder_forward.1} parent=11 // pred_check_branch
          %212 = sbr.rel (%p210) target = $region16
        $region15: #{_encoder_forward.1} parent=11 // pred_region
          %s214 = ssub.s32 256, 256
          %215 = vsyncadd [#allocation3], %s214
          %s216 = sshll.u32 [#allocation2], 4
          %s217 = int_to_ptr.vmem [resolvable:$true] %s216
          %222 = dma.hbm_to_vmem [thread:$0]  %s1, 256, %s217, [#allocation3], 64, 64, 4
        $region16: #{_encoder_forward.1} parent=11 // pred_fallthru
          _
        // Predicated region
        $region17: #{_encoder_forward.1} parent=11 // pred_check
          %p223 = pneg %p85
        $region18: #{_encoder_forward.1} parent=11 // pred_check_branch
          %225 = sbr.rel (%p223) target = $region20
        $region19: #{_encoder_forward.1} parent=11 // pred_region
          _
        $region20: #{_encoder_forward.1} parent=11 // pred_fallthru
          _
        // Predicated region
        $region21: #{_encoder_forward.1} parent=11 // pred_check
          %p226 = pneg %p106
        $region22: #{_encoder_forward.1} parent=11 // pred_check_branch
          %228 = sbr.rel (%p226) target = $region24
        $region23: #{_encoder_forward.1} parent=11 // pred_region
          _
        $region24: #{_encoder_forward.1} parent=11 // pred_fallthru
          _
        // Predicated region
        $region25: #{_encoder_forward.1} parent=11 // pred_check
          %p229 = pneg %p127
        $region26: #{_encoder_forward.1} parent=11 // pred_check_branch
          %231 = sbr.rel (%p229) target = $region28
        $region27: #{_encoder_forward.1} parent=11 // pred_region
          _
        $region28: #{_encoder_forward.1} parent=11 // pred_fallthru
          _
        // Predicated region
        $region29: #{_encoder_forward.1} parent=11 // pred_check
          %p232 = pneg %p148
        $region30: #{_encoder_forward.1} parent=11 // pred_check_branch
          %234 = sbr.rel (%p232) target = $region32
        $region31: #{_encoder_forward.1} parent=11 // pred_region
          _
        $region32: #{_encoder_forward.1} parent=11 // pred_fallthru
          _
        // Predicated region
        $region33: #{_encoder_forward.1} parent=11 // pred_check
          %p235 = pneg %p169
        $region34: #{_encoder_forward.1} parent=11 // pred_check_branch
          %237 = sbr.rel (%p235) target = $region36
        $region35: #{_encoder_forward.1} parent=11 // pred_region
          _
        $region36: #{_encoder_forward.1} parent=11 // pred_fallthru
          _
      $region12: #{_encoder_forward.1} parent=5 // pred_fallthru
        _
      %p238 = scmp.lt.s32.totalorder %s17, 2
      // Predicated region
      $region37: #{_encoder_forward.1} parent=5 // pred_check
        %p239 = pneg %p238
      $region38: #{_encoder_forward.1} parent=5 // pred_check_branch
        %241 = sbr.rel (%p239) target = $region40
      $region39: #{_encoder_forward.1} parent=5 // pred_region
        // Predicated region
        $region41: #{_encoder_forward.1} parent=39 // pred_check
          %p242 = pneg %p37
        $region42: #{_encoder_forward.1} parent=39 // pred_check_branch
          %244 = sbr.rel (%p242) target = $region44
        $region43: #{_encoder_forward.1} parent=39 // pred_region
          %s245 = smul.u32 16, %s17
          %s246 = ssub.s32 25, %s245
          %p247 = scmp.lt.s32.totalorder %s246, 16
          %s248 = scalar_select %p247, %s246, 16
          %s249 = smul.u32 64, %s248
          %p250 = scmp.lt.s32.totalorder %s245, 24
          %s251 = scalar_select %p250, %s245, 24
          %s252 = smul.addr %s251, 4
          %s253 = scalar_lea.vmem %s0, %s252
          %s254 = smul.u32 16, %s17
          %s255 = ssub.s32 25, %s254
          %p256 = scmp.lt.s32.totalorder %s255, 16
          %s257 = scalar_select %p256, %s255, 16
          %s258 = smul.u32 64, %s257
        $region44: #{_encoder_forward.1} parent=39 // pred_fallthru
          _
      $region40: #{_encoder_forward.1} parent=5 // pred_fallthru
        _
      %p259 = scmp.le.s32.totalorder 1, %s17
      %p260 = scmp.lt.s32.totalorder %s17, 3
      %p261 = pnand %p259, %p260
      %p262 = pneg %p261
      // Predicated region
      $region45: #{_encoder_forward.1} parent=5 // pred_check
        _
      $region46: #{_encoder_forward.1} parent=5 // pred_check_branch
        %264 = sbr.rel (%p261) target = $region48
      $region47: #{_encoder_forward.1} parent=5 // pred_region
        %s265 = ssub.s32 %s17, 1
        // Predicated region
        $region49: #{_encoder_forward.1} parent=47 // pred_check
          %p266 = pneg %p64
        $region50: #{_encoder_forward.1} parent=47 // pred_check_branch
          %268 = sbr.rel (%p266) target = $region52
        $region51: #{_encoder_forward.1} parent=47 // pred_region
          %269 = dma.done [#allocation3], 256
        $region52: #{_encoder_forward.1} parent=47 // pred_fallthru
          _
        %s270 = smul.u32 16, %s22
        %s271 = ssub.s32 25, %s270
        %p272 = scmp.lt.s32.totalorder %s271, 16
        %s273 = scalar_select %p272, %s271, 16
        %s274 = smul.u32 64, %s273
        %p275 = scmp.lt.s32.totalorder %s270, 24
        %s276 = scalar_select %p275, %s270, 24
        %s277 = smul.addr %s276, 4
        %s278 = scalar_lea.vmem %s0, %s277
        %p279 = pneg %p43
        %p280 = pneg %p40
        %p281 = pneg %p64
        %p282 = pneg %p61
        %p283 = pneg %p85
        %p284 = pneg %p82
        %p285 = pneg %p106
        %p286 = pneg %p103
        %p287 = pneg %p127
        %p288 = pneg %p124
        %p289 = pneg %p148
        %p290 = pneg %p145
        %p291 = pneg %p169
        %p292 = pneg %p166
        %p293 = pneg %p195
        %p294 = pneg %p192
        %s295 = sand.u32 %s182, 1
        %s296 = scalar_lea.sflag [#allocation4], %s295
        %s297 = sand.u32 %s182, 1
        %s298 = smul.addr %s297, 128
        %s299 = scalar_lea.vmem [#allocation5], %s298
        %s300 = smul.u32 16, %s22
        %s301 = ssub.s32 25, %s300
        %p302 = scmp.lt.s32.totalorder %s301, 16
        %s303 = scalar_select %p302, %s301, 16
        %s304 = smul.u32 64, %s303
        %p305 = scmp.lt.s32.totalorder %s300, 24
        %s306 = scalar_select %p305, %s300, 24
        %s307 = smul.addr %s306, 4
        %s308 = scalar_lea.vmem %s0, %s307
        %s309 = smul.u32 16, %s22
        %s310 = ssub.s32 25, %s309
        %p311 = scmp.lt.s32.totalorder %s310, 16
        %s312 = scalar_select %p311, %s310, 16
        %s313 = smul.u32 64, %s312
        %s314 = smul.u32 16, %s22
        %s315 = ssub.s32 25, %s314
        %p316 = scmp.lt.s32.totalorder %s315, 16
        %s317 = scalar_select %p316, %s315, 16
        %s318 = smul.u32 128, %s317
        %v320 = vld [vmem:[%s308] sm:$0xf]
        %v321 = vld [vmem:[%s308 + $0x4] sm:$0xf]
        %v322 = vld [vmem:[%s308 + $0x8] sm:$0xf]
        %v323 = vld [vmem:[%s308 + $0xc] sm:$0xf]
        %v324 = vld [vmem:[%s308 + $0x10] sm:$0xf]
        %v325 = vld [vmem:[%s308 + $0x14] sm:$0xf]
        %v326 = vld [vmem:[%s308 + $0x18] sm:$0xf]
        %v327 = vld [vmem:[%s308 + $0x1c] sm:$0xf]
        %v328 = vld [vmem:[%s308 + $0x20] sm:$0xf]
        %v329 = vld [vmem:[%s308 + $0x24] sm:$0xf]
        %v330 = vld [vmem:[%s308 + $0x28] sm:$0xf]
        %v331 = vld [vmem:[%s308 + $0x2c] sm:$0xf]
        %v332 = vld [vmem:[%s308 + $0x30] sm:$0xf]
        %v333 = vld [vmem:[%s308 + $0x34] sm:$0xf]
        %v334 = vld [vmem:[%s308 + $0x38] sm:$0xf]
        %v335 = vld [vmem:[%s308 + $0x3c] sm:$0xf]
        %v336 = vld [vmem:[#allocation2] sm:$0xf]
        %v337 = vld [vmem:[#allocation2 + $0x4] sm:$0xf]
        %v338 = vld [vmem:[#allocation2 + $0x8] sm:$0xf]
        %v339 = vld [vmem:[#allocation2 + $0xc] sm:$0xf]
        %v340 = vld [vmem:[%s2] sm:$0x1]
        %v342 = vlaneseq
        %v343 = vshrl.u32 %v342, 7
        %v344 = vsub.s32 0, %v343
        %v345 = vrot.slane %v340, %v344
        %v363 = vunpack.c.l.b16 %v320
        %v364 = vunpack.c.l.b16 %v321
        %v365 = vunpack.c.l.b16 %v322
        %v366 = vunpack.c.l.b16 %v323
        %v367 = vunpack.c.l.b16 %v324
        %v368 = vunpack.c.l.b16 %v325
        %v369 = vunpack.c.l.b16 %v326
        %v370 = vunpack.c.l.b16 %v327
        %v371 = vunpack.c.l.b16 %v328
        %v372 = vunpack.c.l.b16 %v329
        %v373 = vunpack.c.l.b16 %v330
        %v374 = vunpack.c.l.b16 %v331
        %v375 = vunpack.c.l.b16 %v332
        %v376 = vunpack.c.l.b16 %v333
        %v377 = vunpack.c.l.b16 %v334
        %v378 = vunpack.c.l.b16 %v335
        %v379 = vpack.c.b16 %v364, %v363
        %v380 = vpack.c.b16 %v366, %v365
        %v381 = vpack.c.b16 %v368, %v367
        %v382 = vpack.c.b16 %v370, %v369
        %v383 = vpack.c.b16 %v372, %v371
        %v384 = vpack.c.b16 %v374, %v373
        %v385 = vpack.c.b16 %v376, %v375
        %v386 = vpack.c.b16 %v378, %v377
        %v391 = vunpack.c.l.b16 %v336
        %v392 = vunpack.c.l.b16 %v337
        %v393 = vunpack.c.l.b16 %v338
        %v394 = vunpack.c.l.b16 %v339
        %v395 = vpack.c.b16 %v392, %v391
        %v396 = vpack.c.b16 %v394, %v393
        %vm399 = vcmask 261120
        %v401 = vsel %vm399, %v379, 0
        %v404 = vsel %vm399, %v380, 0
        %v407 = vsel %vm399, %v381, 0
        %v410 = vsel %vm399, %v382, 0
        %v413 = vsel %vm399, %v383, 0
        %v416 = vsel %vm399, %v384, 0
        %v419 = vsel %vm399, %v385, 0
        %v422 = vsel %vm399, %v386, 0
        %424 = vmatprep.subr.bf16.mxu0 0
        %425 = vmatpush1.bf16.msra.mxu0 %v395
        %426 = vmatprep.subr.bf16.mxu0 0
        %427 = vmatpush1.bf16.msra.mxu0 %v396
        %428 = vmatprep.subr.bf16.mxu0 0
        %429 = vmatpush1.bf16.msra.mxu0 0
        %430 = vmatprep.subr.bf16.mxu0 0
        %431 = vmatpush1.bf16.msra.mxu0 0
        %432 = vmatprep.subr.bf16.mxu0 0
        %433 = vmatpush1.bf16.msra.mxu0 0
        %434 = vmatprep.subr.bf16.mxu0 0
        %435 = vmatpush1.bf16.msra.mxu0 0
        %436 = vmatprep.subr.bf16.mxu0 0
        %437 = vmatpush1.bf16.msra.mxu0 0
        %438 = vmatprep.subr.bf16.mxu0 0
        %439 = vmatpush1.bf16.msra.mxu0 0
        %440 = vmatprep.subr.bf16.mxu0 0
        %441 = vmatpush1.bf16.msra.mxu0 0
        %442 = vmatprep.subr.bf16.mxu0 0
        %443 = vmatpush1.bf16.msra.mxu0 0
        %444 = vmatprep.subr.bf16.mxu0 0
        %445 = vmatpush1.bf16.msra.mxu0 0
        %446 = vmatprep.subr.bf16.mxu0 0
        %447 = vmatpush1.bf16.msra.mxu0 0
        %448 = vmatprep.subr.bf16.mxu0 0
        %449 = vmatpush1.bf16.msra.mxu0 0
        %450 = vmatprep.subr.bf16.mxu0 0
        %451 = vmatpush1.bf16.msra.mxu0 0
        %452 = vmatprep.subr.bf16.mxu0 0
        %453 = vmatpush1.bf16.msra.mxu0 0
        %454 = vmatprep.subr.bf16.mxu0 0
        %455 = vmatpush1.bf16.msra.mxu0 0
        %456 = vmatprep.mubr.bf16.mxu0 0
        %457 = vmatmul.mubr.bf16.gmra.mrb[0].mxu0 %v401
        %v458 = vpop.f32.mrb[0].mxu0
        %v459 = vadd.f32 %v345, %v458
        %v460 = vpop.f32.mrb[0].mxu0
        %v461 = vpop.f32.mrb[0].mxu0
        %v462 = vadd.f32 %v345, %v461
        %v463 = vpop.f32.mrb[0].mxu0
        %464 = vmatprep.mubr.bf16.mxu0 0
        %465 = vmatmul.mubr.bf16.gmra.mrb[0].mxu0 %v404
        %v466 = vpop.f32.mrb[0].mxu0
        %v467 = vadd.f32 %v345, %v466
        %v468 = vpop.f32.mrb[0].mxu0
        %v469 = vpop.f32.mrb[0].mxu0
        %v470 = vadd.f32 %v345, %v469
        %v471 = vpop.f32.mrb[0].mxu0
        %472 = vmatprep.mubr.bf16.mxu0 0
        %473 = vmatmul.mubr.bf16.gmra.mrb[0].mxu0 %v407
        %v474 = vpop.f32.mrb[0].mxu0
        %v475 = vadd.f32 %v345, %v474
        %v476 = vpop.f32.mrb[0].mxu0
        %v477 = vpop.f32.mrb[0].mxu0
        %v478 = vadd.f32 %v345, %v477
        %v479 = vpop.f32.mrb[0].mxu0
        %480 = vmatprep.mubr.bf16.mxu0 0
        %481 = vmatmul.mubr.bf16.gmra.mrb[0].mxu0 %v410
        %v482 = vpop.f32.mrb[0].mxu0
        %v483 = vadd.f32 %v345, %v482
        %v484 = vpop.f32.mrb[0].mxu0
        %v485 = vpop.f32.mrb[0].mxu0
        %v486 = vadd.f32 %v345, %v485
        %v487 = vpop.f32.mrb[0].mxu0
        %488 = vmatprep.mubr.bf16.mxu0 0
        %489 = vmatmul.mubr.bf16.gmra.mrb[0].mxu0 %v413
        %v490 = vpop.f32.mrb[0].mxu0
        %v491 = vadd.f32 %v345, %v490
        %v492 = vpop.f32.mrb[0].mxu0
        %v493 = vpop.f32.mrb[0].mxu0
        %v494 = vadd.f32 %v345, %v493
        %v495 = vpop.f32.mrb[0].mxu0
        %496 = vmatprep.mubr.bf16.mxu0 0
        %497 = vmatmul.mubr.bf16.gmra.mrb[0].mxu0 %v416
        %v498 = vpop.f32.mrb[0].mxu0
        %v499 = vadd.f32 %v345, %v498
        %v500 = vpop.f32.mrb[0].mxu0
        %v501 = vpop.f32.mrb[0].mxu0
        %v502 = vadd.f32 %v345, %v501
        %v503 = vpop.f32.mrb[0].mxu0
        %504 = vmatprep.mubr.bf16.mxu0 0
        %505 = vmatmul.mubr.bf16.gmra.mrb[0].mxu0 %v419
        %v506 = vpop.f32.mrb[0].mxu0
        %v507 = vadd.f32 %v345, %v506
        %v508 = vpop.f32.mrb[0].mxu0
        %v509 = vpop.f32.mrb[0].mxu0
        %v510 = vadd.f32 %v345, %v509
        %v511 = vpop.f32.mrb[0].mxu0
        %512 = vmatprep.mubr.bf16.mxu0 0
        %513 = vmatmul.mubr.bf16.gmra.mrb[0].mxu0 %v422
        %v514 = vpop.f32.mrb[0].mxu0
        %v515 = vadd.f32 %v345, %v514
        %v516 = vpop.f32.mrb[0].mxu0
        %v517 = vpop.f32.mrb[0].mxu0
        %v518 = vadd.f32 %v345, %v517
        %v519 = vpop.f32.mrb[0].mxu0
        %520 = vdwg.mxu0
        %v521 = vmax.f32 %v459, 0.0
        %v522 = vmax.f32 %v462, 0.0
        %v523 = vmax.f32 %v467, 0.0
        %v524 = vmax.f32 %v470, 0.0
        %v525 = vmax.f32 %v475, 0.0
        %v526 = vmax.f32 %v478, 0.0
        %v527 = vmax.f32 %v483, 0.0
        %v528 = vmax.f32 %v486, 0.0
        %v529 = vmax.f32 %v491, 0.0
        %v530 = vmax.f32 %v494, 0.0
        %v531 = vmax.f32 %v499, 0.0
        %v532 = vmax.f32 %v502, 0.0
        %v533 = vmax.f32 %v507, 0.0
        %v534 = vmax.f32 %v510, 0.0
        %v535 = vmax.f32 %v515, 0.0
        %v536 = vmax.f32 %v518, 0.0
        %v537 = vpack.c.bf16 %v522, %v521
        %v538 = vpack.c.bf16 %v524, %v523
        %v539 = vpack.c.bf16 %v526, %v525
        %v540 = vpack.c.bf16 %v528, %v527
        %v541 = vpack.c.bf16 %v530, %v529
        %v542 = vpack.c.bf16 %v532, %v531
        %v543 = vpack.c.bf16 %v534, %v533
        %v544 = vpack.c.bf16 %v536, %v535
        %v545 = vld [vmem:[%s3] sm:$0xf]
        %v546 = vld [vmem:[%s3 + $0x4] sm:$0xf]
        %v547 = vld [vmem:[%s3 + $0x8] sm:$0xf]
        %v548 = vld [vmem:[%s3 + $0xc] sm:$0xf]
        %v549 = vld [vmem:[%s3 + $0x10] sm:$0xf]
        %v550 = vld [vmem:[%s3 + $0x14] sm:$0xf]
        %v551 = vld [vmem:[%s3 + $0x18] sm:$0xf]
        %v552 = vld [vmem:[%s3 + $0x1c] sm:$0xf]
        %v553 = vld [vmem:[%s3 + $0x20] sm:$0xf]
        %v554 = vld [vmem:[%s3 + $0x24] sm:$0xf]
        %v555 = vld [vmem:[%s3 + $0x28] sm:$0xf]
        %v556 = vld [vmem:[%s3 + $0x2c] sm:$0xf]
        %v557 = vld [vmem:[%s3 + $0x30] sm:$0xf]
        %v558 = vld [vmem:[%s3 + $0x34] sm:$0xf]
        %v559 = vld [vmem:[%s3 + $0x38] sm:$0xf]
        %v560 = vld [vmem:[%s3 + $0x3c] sm:$0xf]
        %v561 = vld [vmem:[%s4] sm:$0x1]
        %v563 = vlaneseq
        %v564 = vshrl.u32 %v563, 7
        %v565 = vsub.s32 0, %v564
        %v566 = vrot.slane %v561, %v565
        %v584 = vunpack.c.l.b16 %v545
        %v585 = vunpack.c.l.b16 %v546
        %v586 = vunpack.c.l.b16 %v547
        %v587 = vunpack.c.l.b16 %v548
        %v588 = vunpack.c.l.b16 %v549
        %v589 = vunpack.c.l.b16 %v550
        %v590 = vunpack.c.l.b16 %v551
        %v591 = vunpack.c.l.b16 %v552
        %v592 = vunpack.c.l.b16 %v553
        %v593 = vunpack.c.l.b16 %v554
        %v594 = vunpack.c.l.b16 %v555
        %v595 = vunpack.c.l.b16 %v556
        %v596 = vunpack.c.l.b16 %v557
        %v597 = vunpack.c.l.b16 %v558
        %v598 = vunpack.c.l.b16 %v559
        %v599 = vunpack.c.l.b16 %v560
        %v600 = vpack.c.b16 %v585, %v584
        %v601 = vpack.c.b16 %v587, %v586
        %v602 = vpack.c.b16 %v589, %v588
        %v603 = vpack.c.b16 %v591, %v590
        %v604 = vpack.c.b16 %v593, %v592
        %v605 = vpack.c.b16 %v595, %v594
        %v606 = vpack.c.b16 %v597, %v596
        %v607 = vpack.c.b16 %v599, %v598
        %616 = vmatprep.subr.bf16.mxu0 0
        %617 = vmatpush1.bf16.msra.mxu0 %v600
        %618 = vmatprep.subr.bf16.mxu0 0
        %619 = vmatpush1.bf16.msra.mxu0 %v601
        %620 = vmatprep.subr.bf16.mxu0 0
        %621 = vmatpush1.bf16.msra.mxu0 %v602
        %622 = vmatprep.subr.bf16.mxu0 0
        %623 = vmatpush1.bf16.msra.mxu0 %v603
        %624 = vmatprep.subr.bf16.mxu0 0
        %625 = vmatpush1.bf16.msra.mxu0 %v604
        %626 = vmatprep.subr.bf16.mxu0 0
        %627 = vmatpush1.bf16.msra.mxu0 %v605
        %628 = vmatprep.subr.bf16.mxu0 0
        %629 = vmatpush1.bf16.msra.mxu0 %v606
        %630 = vmatprep.subr.bf16.mxu0 0
        %631 = vmatpush1.bf16.msra.mxu0 %v607
        %632 = vmatprep.subr.bf16.mxu0 0
        %633 = vmatpush1.bf16.msra.mxu0 0
        %634 = vmatprep.subr.bf16.mxu0 0
        %635 = vmatpush1.bf16.msra.mxu0 0
        %636 = vmatprep.subr.bf16.mxu0 0
        %637 = vmatpush1.bf16.msra.mxu0 0
        %638 = vmatprep.subr.bf16.mxu0 0
        %639 = vmatpush1.bf16.msra.mxu0 0
        %640 = vmatprep.subr.bf16.mxu0 0
        %641 = vmatpush1.bf16.msra.mxu0 0
        %642 = vmatprep.subr.bf16.mxu0 0
        %643 = vmatpush1.bf16.msra.mxu0 0
        %644 = vmatprep.subr.bf16.mxu0 0
        %645 = vmatpush1.bf16.msra.mxu0 0
        %646 = vmatprep.subr.bf16.mxu0 0
        %647 = vmatpush1.bf16.msra.mxu0 0
        %648 = vmatprep.mubr.bf16.mxu0 0
        %649 = vmatmul.mubr.bf16.gmra.mrb[0].mxu0 %v537
        %v650 = vpop.f32.mrb[0].mxu0
        %v651 = vadd.f32 %v566, %v650
        %v652 = vpop.f32.mrb[0].mxu0
        %v653 = vpop.f32.mrb[0].mxu0
        %v654 = vadd.f32 %v566, %v653
        %v655 = vpop.f32.mrb[0].mxu0
        %656 = vmatprep.mubr.bf16.mxu0 0
        %657 = vmatmul.mubr.bf16.gmra.mrb[0].mxu0 %v538
        %v658 = vpop.f32.mrb[0].mxu0
        %v659 = vadd.f32 %v566, %v658
        %v660 = vpop.f32.mrb[0].mxu0
        %v661 = vpop.f32.mrb[0].mxu0
        %v662 = vadd.f32 %v566, %v661
        %v663 = vpop.f32.mrb[0].mxu0
        %664 = vmatprep.mubr.bf16.mxu0 0
        %665 = vmatmul.mubr.bf16.gmra.mrb[0].mxu0 %v539
        %v666 = vpop.f32.mrb[0].mxu0
        %v667 = vadd.f32 %v566, %v666
        %v668 = vpop.f32.mrb[0].mxu0
        %v669 = vpop.f32.mrb[0].mxu0
        %v670 = vadd.f32 %v566, %v669
        %v671 = vpop.f32.mrb[0].mxu0
        %672 = vmatprep.mubr.bf16.mxu0 0
        %673 = vmatmul.mubr.bf16.gmra.mrb[0].mxu0 %v540
        %v674 = vpop.f32.mrb[0].mxu0
        %v675 = vadd.f32 %v566, %v674
        %v676 = vpop.f32.mrb[0].mxu0
        %v677 = vpop.f32.mrb[0].mxu0
        %v678 = vadd.f32 %v566, %v677
        %v679 = vpop.f32.mrb[0].mxu0
        %680 = vmatprep.mubr.bf16.mxu0 0
        %681 = vmatmul.mubr.bf16.gmra.mrb[0].mxu0 %v541
        %v682 = vpop.f32.mrb[0].mxu0
        %v683 = vadd.f32 %v566, %v682
        %v684 = vpop.f32.mrb[0].mxu0
        %v685 = vpop.f32.mrb[0].mxu0
        %v686 = vadd.f32 %v566, %v685
        %v687 = vpop.f32.mrb[0].mxu0
        %688 = vmatprep.mubr.bf16.mxu0 0
        %689 = vmatmul.mubr.bf16.gmra.mrb[0].mxu0 %v542
        %v690 = vpop.f32.mrb[0].mxu0
        %v691 = vadd.f32 %v566, %v690
        %v692 = vpop.f32.mrb[0].mxu0
        %v693 = vpop.f32.mrb[0].mxu0
        %v694 = vadd.f32 %v566, %v693
        %v695 = vpop.f32.mrb[0].mxu0
        %696 = vmatprep.mubr.bf16.mxu0 0
        %697 = vmatmul.mubr.bf16.gmra.mrb[0].mxu0 %v543
        %v698 = vpop.f32.mrb[0].mxu0
        %v699 = vadd.f32 %v566, %v698
        %v700 = vpop.f32.mrb[0].mxu0
        %v701 = vpop.f32.mrb[0].mxu0
        %v702 = vadd.f32 %v566, %v701
        %v703 = vpop.f32.mrb[0].mxu0
        %704 = vmatprep.mubr.bf16.mxu0 0
        %705 = vmatmul.mubr.bf16.gmra.mrb[0].mxu0 %v544
        %v706 = vpop.f32.mrb[0].mxu0
        %v707 = vadd.f32 %v566, %v706
        %v708 = vpop.f32.mrb[0].mxu0
        %v709 = vpop.f32.mrb[0].mxu0
        %v710 = vadd.f32 %v566, %v709
        %v711 = vpop.f32.mrb[0].mxu0
        %712 = vdwg.mxu0
        %v713 = vmax.f32 %v651, 0.0
        %v714 = vmax.f32 %v654, 0.0
        %v715 = vmax.f32 %v659, 0.0
        %v716 = vmax.f32 %v662, 0.0
        %v717 = vmax.f32 %v667, 0.0
        %v718 = vmax.f32 %v670, 0.0
        %v719 = vmax.f32 %v675, 0.0
        %v720 = vmax.f32 %v678, 0.0
        %v721 = vmax.f32 %v683, 0.0
        %v722 = vmax.f32 %v686, 0.0
        %v723 = vmax.f32 %v691, 0.0
        %v724 = vmax.f32 %v694, 0.0
        %v725 = vmax.f32 %v699, 0.0
        %v726 = vmax.f32 %v702, 0.0
        %v727 = vmax.f32 %v707, 0.0
        %v728 = vmax.f32 %v710, 0.0
        %v729 = vpack.c.bf16 %v714, %v713
        %v730 = vpack.c.bf16 %v716, %v715
        %v731 = vpack.c.bf16 %v718, %v717
        %v732 = vpack.c.bf16 %v720, %v719
        %v733 = vpack.c.bf16 %v722, %v721
        %v734 = vpack.c.bf16 %v724, %v723
        %v735 = vpack.c.bf16 %v726, %v725
        %v736 = vpack.c.bf16 %v728, %v727
        %v737 = vld [vmem:[%s5] sm:$0xf]
        %v738 = vld [vmem:[%s5 + $0x4] sm:$0xf]
        %v739 = vld [vmem:[%s5 + $0x8] sm:$0xf]
        %v740 = vld [vmem:[%s5 + $0xc] sm:$0xf]
        %v741 = vld [vmem:[%s5 + $0x10] sm:$0xf]
        %v742 = vld [vmem:[%s5 + $0x14] sm:$0xf]
        %v743 = vld [vmem:[%s5 + $0x18] sm:$0xf]
        %v744 = vld [vmem:[%s5 + $0x1c] sm:$0xf]
        %v745 = vld [vmem:[%s5 + $0x20] sm:$0xf]
        %v746 = vld [vmem:[%s5 + $0x24] sm:$0xf]
        %v747 = vld [vmem:[%s5 + $0x28] sm:$0xf]
        %v748 = vld [vmem:[%s5 + $0x2c] sm:$0xf]
        %v749 = vld [vmem:[%s5 + $0x30] sm:$0xf]
        %v750 = vld [vmem:[%s5 + $0x34] sm:$0xf]
        %v751 = vld [vmem:[%s5 + $0x38] sm:$0xf]
        %v752 = vld [vmem:[%s5 + $0x3c] sm:$0xf]
        %v753 = vld [vmem:[%s6] sm:$0x1]
        %v755 = vlaneseq
        %v756 = vshrl.u32 %v755, 7
        %v757 = vsub.s32 0, %v756
        %v758 = vrot.slane %v753, %v757
        %v776 = vunpack.c.l.b16 %v737
        %v777 = vunpack.c.l.b16 %v738
        %v778 = vunpack.c.l.b16 %v739
        %v779 = vunpack.c.l.b16 %v740
        %v780 = vunpack.c.l.b16 %v741
        %v781 = vunpack.c.l.b16 %v742
        %v782 = vunpack.c.l.b16 %v743
        %v783 = vunpack.c.l.b16 %v744
        %v784 = vunpack.c.l.b16 %v745
        %v785 = vunpack.c.l.b16 %v746
        %v786 = vunpack.c.l.b16 %v747
        %v787 = vunpack.c.l.b16 %v748
        %v788 = vunpack.c.l.b16 %v749
        %v789 = vunpack.c.l.b16 %v750
        %v790 = vunpack.c.l.b16 %v751
        %v791 = vunpack.c.l.b16 %v752
        %v792 = vpack.c.b16 %v777, %v776
        %v793 = vpack.c.b16 %v779, %v778
        %v794 = vpack.c.b16 %v781, %v780
        %v795 = vpack.c.b16 %v783, %v782
        %v796 = vpack.c.b16 %v785, %v784
        %v797 = vpack.c.b16 %v787, %v786
        %v798 = vpack.c.b16 %v789, %v788
        %v799 = vpack.c.b16 %v791, %v790
        %808 = vmatprep.subr.bf16.mxu0 0
        %809 = vmatpush1.bf16.msra.mxu0 %v792
        %810 = vmatprep.subr.bf16.mxu0 0
        %811 = vmatpush1.bf16.msra.mxu0 %v793
        %812 = vmatprep.subr.bf16.mxu0 0
        %813 = vmatpush1.bf16.msra.mxu0 %v794
        %814 = vmatprep.subr.bf16.mxu0 0
        %815 = vmatpush1.bf16.msra.mxu0 %v795
        %816 = vmatprep.subr.bf16.mxu0 0
        %817 = vmatpush1.bf16.msra.mxu0 %v796
        %818 = vmatprep.subr.bf16.mxu0 0
        %819 = vmatpush1.bf16.msra.mxu0 %v797
        %820 = vmatprep.subr.bf16.mxu0 0
        %821 = vmatpush1.bf16.msra.mxu0 %v798
        %822 = vmatprep.subr.bf16.mxu0 0
        %823 = vmatpush1.bf16.msra.mxu0 %v799
        %824 = vmatprep.subr.bf16.mxu0 0
        %825 = vmatpush1.bf16.msra.mxu0 0
        %826 = vmatprep.subr.bf16.mxu0 0
        %827 = vmatpush1.bf16.msra.mxu0 0
        %828 = vmatprep.subr.bf16.mxu0 0
        %829 = vmatpush1.bf16.msra.mxu0 0
        %830 = vmatprep.subr.bf16.mxu0 0
        %831 = vmatpush1.bf16.msra.mxu0 0
        %832 = vmatprep.subr.bf16.mxu0 0
        %833 = vmatpush1.bf16.msra.mxu0 0
        %834 = vmatprep.subr.bf16.mxu0 0
        %835 = vmatpush1.bf16.msra.mxu0 0
        %836 = vmatprep.subr.bf16.mxu0 0
        %837 = vmatpush1.bf16.msra.mxu0 0
        %838 = vmatprep.subr.bf16.mxu0 0
        %839 = vmatpush1.bf16.msra.mxu0 0
        %840 = vmatprep.mubr.bf16.mxu0 0
        %841 = vmatmul.mubr.bf16.gmra.mrb[0].mxu0 %v729
        %v842 = vpop.f32.mrb[0].mxu0
        %v843 = vadd.f32 %v758, %v842
        %v844 = vpop.f32.mrb[0].mxu0
        %v845 = vpop.f32.mrb[0].mxu0
        %v846 = vadd.f32 %v758, %v845
        %v847 = vpop.f32.mrb[0].mxu0
        %848 = vmatprep.mubr.bf16.mxu0 0
        %849 = vmatmul.mubr.bf16.gmra.mrb[0].mxu0 %v730
        %v850 = vpop.f32.mrb[0].mxu0
        %v851 = vadd.f32 %v758, %v850
        %v852 = vpop.f32.mrb[0].mxu0
        %v853 = vpop.f32.mrb[0].mxu0
        %v854 = vadd.f32 %v758, %v853
        %v855 = vpop.f32.mrb[0].mxu0
        %856 = vmatprep.mubr.bf16.mxu0 0
        %857 = vmatmul.mubr.bf16.gmra.mrb[0].mxu0 %v731
        %v858 = vpop.f32.mrb[0].mxu0
        %v859 = vadd.f32 %v758, %v858
        %v860 = vpop.f32.mrb[0].mxu0
        %v861 = vpop.f32.mrb[0].mxu0
        %v862 = vadd.f32 %v758, %v861
        %v863 = vpop.f32.mrb[0].mxu0
        %864 = vmatprep.mubr.bf16.mxu0 0
        %865 = vmatmul.mubr.bf16.gmra.mrb[0].mxu0 %v732
        %v866 = vpop.f32.mrb[0].mxu0
        %v867 = vadd.f32 %v758, %v866
        %v868 = vpop.f32.mrb[0].mxu0
        %v869 = vpop.f32.mrb[0].mxu0
        %v870 = vadd.f32 %v758, %v869
        %v871 = vpop.f32.mrb[0].mxu0
        %872 = vmatprep.mubr.bf16.mxu0 0
        %873 = vmatmul.mubr.bf16.gmra.mrb[0].mxu0 %v733
        %v874 = vpop.f32.mrb[0].mxu0
        %v875 = vadd.f32 %v758, %v874
        %v876 = vpop.f32.mrb[0].mxu0
        %v877 = vpop.f32.mrb[0].mxu0
        %v878 = vadd.f32 %v758, %v877
        %v879 = vpop.f32.mrb[0].mxu0
        %880 = vmatprep.mubr.bf16.mxu0 0
        %881 = vmatmul.mubr.bf16.gmra.mrb[0].mxu0 %v734
        %v882 = vpop.f32.mrb[0].mxu0
        %v883 = vadd.f32 %v758, %v882
        %v884 = vpop.f32.mrb[0].mxu0
        %v885 = vpop.f32.mrb[0].mxu0
        %v886 = vadd.f32 %v758, %v885
        %v887 = vpop.f32.mrb[0].mxu0
        %888 = vmatprep.mubr.bf16.mxu0 0
        %889 = vmatmul.mubr.bf16.gmra.mrb[0].mxu0 %v735
        %v890 = vpop.f32.mrb[0].mxu0
        %v891 = vadd.f32 %v758, %v890
        %v892 = vpop.f32.mrb[0].mxu0
        %v893 = vpop.f32.mrb[0].mxu0
        %v894 = vadd.f32 %v758, %v893
        %v895 = vpop.f32.mrb[0].mxu0
        %896 = vmatprep.mubr.bf16.mxu0 0
        %897 = vmatmul.mubr.bf16.gmra.mrb[0].mxu0 %v736
        %v898 = vpop.f32.mrb[0].mxu0
        %v899 = vadd.f32 %v758, %v898
        %v900 = vpop.f32.mrb[0].mxu0
        %v901 = vpop.f32.mrb[0].mxu0
        %v902 = vadd.f32 %v758, %v901
        %v903 = vpop.f32.mrb[0].mxu0
        %904 = vdwg.mxu0
        %905 = vst [vmem:[%s299] sm:$0xff] %v843
        %906 = vst [vmem:[%s299 + $0x8] sm:$0xff] %v846
        %907 = vst [vmem:[%s299 + $0x10] sm:$0xff] %v851
        %908 = vst [vmem:[%s299 + $0x18] sm:$0xff] %v854
        %909 = vst [vmem:[%s299 + $0x20] sm:$0xff] %v859
        %910 = vst [vmem:[%s299 + $0x28] sm:$0xff] %v862
        %911 = vst [vmem:[%s299 + $0x30] sm:$0xff] %v867
        %912 = vst [vmem:[%s299 + $0x38] sm:$0xff] %v870
        %913 = vst [vmem:[%s299 + $0x40] sm:$0xff] %v875
        %914 = vst [vmem:[%s299 + $0x48] sm:$0xff] %v878
        %915 = vst [vmem:[%s299 + $0x50] sm:$0xff] %v883
        %916 = vst [vmem:[%s299 + $0x58] sm:$0xff] %v886
        %917 = vst [vmem:[%s299 + $0x60] sm:$0xff] %v891
        %918 = vst [vmem:[%s299 + $0x68] sm:$0xff] %v894
        %919 = vst [vmem:[%s299 + $0x70] sm:$0xff] %v899
        %920 = vst [vmem:[%s299 + $0x78] sm:$0xff] %v902
        %s921 = sand.u32 %s182, 1
        %s922 = scalar_lea.sflag [#allocation4], %s921
        %s923 = sand.u32 %s182, 1
        %s924 = smul.addr %s923, 128
        %s925 = scalar_lea.vmem [#allocation5], %s924
        // Predicated region
        $region53: #{_encoder_forward.1} parent=47 // pred_check
          %p926 = pneg %p192
        $region54: #{_encoder_forward.1} parent=47 // pred_check_branch
          %928 = sbr.rel (%p926) target = $region56
        $region55: #{_encoder_forward.1} parent=47 // pred_region
          %s929 = smul.u32 16, %s22
          %s930 = ssub.s32 25, %s929
          %p931 = scmp.lt.s32.totalorder %s930, 16
          %s932 = scalar_select %p931, %s930, 16
          %s933 = smul.u32 128, %s932
          %s935 = ssub.s32 2048, %s933
          %936 = vsyncadd %s922, %s935
          %p937 = scmp.ne.s32.totalorder 0, %s933
          %s938 = smul.addr %s929, 128
          %s939 = scalar_lea.hbm %s7, %s938
          %s940 = smul.u32 8, %s932
          %s941 = sshll.u32 %s925, 4
          %s942 = int_to_ptr.vmem [resolvable:$true] %s941
          %s943 = sshll.u32 %s940, 4
          %947 = dma.vmem_to_hbm [thread:$0]  (%p937), %s942, %s943, %s939, %s922, 128, 128, 8
        $region56: #{_encoder_forward.1} parent=47 // pred_fallthru
          _
      $region48: #{_encoder_forward.1} parent=5 // pred_fallthru
        _
      %p948 = scmp.le.s32.totalorder 2, %s17
      // Predicated region
      $region57: #{_encoder_forward.1} parent=5 // pred_check
        %p949 = pneg %p948
      $region58: #{_encoder_forward.1} parent=5 // pred_check_branch
        %951 = sbr.rel (%p949) target = $region60
      $region59: #{_encoder_forward.1} parent=5 // pred_region
        %s952 = ssub.s32 %s17, 2
        // Predicated region
        $region61: #{_encoder_forward.1} parent=59 // pred_check
          %p953 = pneg %p198
        $region62: #{_encoder_forward.1} parent=59 // pred_check_branch
          %955 = sbr.rel (%p953) target = $region64
        $region63: #{_encoder_forward.1} parent=59 // pred_region
          %s956 = sand.u32 %s183, 1
          %s957 = scalar_lea.sflag [#allocation4], %s956
          %s958 = sand.u32 %s183, 1
          %s959 = smul.addr %s958, 128
          %s960 = scalar_lea.vmem [#allocation5], %s959
          %961 = dma.done %s957, 2048
        $region64: #{_encoder_forward.1} parent=59 // pred_fallthru
          _
      $region60: #{_encoder_forward.1} parent=5 // pred_fallthru
        _
    $region6: #{_encoder_forward.1} parent=1 // loop_footer
      %s21 = sadd.s32 1, %s17
    $region7: #{_encoder_forward.1} parent=1 // loop_footer_branch
      %16 = sbr.rel target = $region3
    $region8: #{_encoder_forward.1} parent=1 // loop_exit
      _
    %962 = vsyncpa [#allocation3], 1
    %s963 = scalar_lea.sflag [#allocation3], 1
    %964 = vsyncpa %s963, 1
    %965 = vsyncpa [#allocation4], 1
    %s966 = scalar_lea.sflag [#allocation4], 1
    %967 = vsyncpa %s966, 1

</llo_original>
